<compile_context>
chip_gen: v7x
topology: tpu7x:2x2x1
jax: 0.10.0
libtpu: 0.0.40
codegen_flags: <defaults>
</compile_context>

<pallas_src>
import functools

import jax
import jax.numpy as jnp
from jax import lax
from jax.experimental import pallas as pl
from jax.experimental.pallas import tpu as pltpu


def glove_blstm_kernel(x_ref, w_in_ref, b_in_ref, whh_ref,
                       w1_ref, b1_ref, w2_ref, b2_ref, out_ref):
    S = x_ref.shape[0]
    Hc = whh_ref.shape[0]          # 2 * H  (both directions packed)
    H = Hc // 2
    G = 4 * Hc                     # 8 * H gate lanes (= 128 for hidden_dim=32)

    # Fused input projection for both directions / all gates: one lane-dense
    # MXU pass.  Column layout is gate-major:
    #   [ i_f i_b | f_f f_b | g_f g_b | o_f o_b ], each sub-block H wide,
    # with the i/f/o columns pre-scaled by 0.5 (see prepare_params).
    xg = (jnp.dot(x_ref[...], w_in_ref[...], preferred_element_type=jnp.float32)
          + b_in_ref[...])                                  # (S, 8H)

    lane = lax.broadcasted_iota(jnp.int32, (1, G), 1)
    fwd_lane = (lane % Hc) < H                              # fwd half of each gate block
    g_lane = (lane >= 2 * Hc) & (lane < 3 * Hc)             # candidate (tanh) block

    # Hoisted direction schedule: row t carries token t on the forward lanes
    # and token S-1-t on the backward lanes (one select on a single vreg;
    # the row reversal is built from static slices + one sublane concat).
    xg_rev = jnp.concatenate([xg[S - 1 - t:S - t, :] for t in range(S)], axis=0)
    xg_sched = jnp.where(fwd_lane, xg, xg_rev)              # (S, 8H)

    whh = whh_ref[...]                                      # (2H, 8H), block-diag, pre-scaled
    h = jnp.zeros((1, Hc), jnp.float32)                     # [h_f | h_b]
    c = jnp.zeros((1, Hc), jnp.float32)                     # [c_f | c_b]
    h_rows = []

    # Fully unrolled fused recurrence: one (1,2H)x(2H,8H) matmul and ONE
    # full-vreg tanh per step.  sigmoid(z) = 0.5*tanh(z/2) + 0.5, and the
    # i/f/o columns of w_in/whh/b_in were pre-scaled by 0.5, so a single tanh
    # yields every gate; a select keeps tanh for the g block.
    for t in range(S):
        gates = xg_sched[t:t + 1, :] + jnp.dot(
            h, whh, preferred_element_type=jnp.float32)     # (1, 8H)
        th = jnp.tanh(gates)                                # single full-vreg EUP pass
        acts = jnp.where(g_lane, th, 0.5 * th + 0.5)
        i_g = acts[:, 0:Hc]
        f_g = acts[:, Hc:2 * Hc]
        g_g = acts[:, 2 * Hc:3 * Hc]
        o_g = acts[:, 3 * Hc:4 * Hc]
        c = f_g * c + i_g * g_g
        h = o_g * jnp.tanh(c)
        h_rows.append(h)                                    # register-resident history

    # Reassemble register-resident hidden states into (S, 2H) lstm_out:
    # position p takes the forward half of step p and the backward half of
    # step S-1-p (two sublane concats + one lane select, no scratch).
    h_fwd = jnp.concatenate(h_rows, axis=0)                 # row p = step p
    h_bwd = jnp.concatenate(h_rows[::-1], axis=0)           # row p = step S-1-p
    lane_h = lax.broadcasted_iota(jnp.int32, (1, Hc), 1)
    lstm_out = jnp.where(lane_h < H, h_fwd, h_bwd)          # (S, 2H)

    # Head: dropout (identity in eval) -> Linear -> ELU -> Linear.
    # TODO(synk): nn.Dropout(p=0.33) is identity in eval mode; stochastic mask not applied.
    t1 = (jnp.dot(lstm_out, w1_ref[...], preferred_element_type=jnp.float32)
          + b1_ref[...])                                    # (S, Ho)
    elu = jnp.where(t1 > 0, t1, jnp.exp(jnp.minimum(t1, 0.0)) - 1.0)   # ELU, alpha=1
    out_ref[...] = (jnp.dot(elu, w2_ref[...], preferred_element_type=jnp.float32)
                    + b2_ref[...])                          # (S, Tp) lane-dense store


def prepare_params(wih_f, whh_f, bih_f, bhh_f,
                   wih_b, whh_b, bih_b, bhh_b,
                   w1, b1, w2, b2):
    """One-time fusion/transposition of PyTorch-layout weights (hoisted out of
    the per-call path).  Gate-major fused column layout:
        [ i_f i_b | f_f f_b | g_f g_b | o_f o_b ], each sub-block H wide.
    The i/f/o gate columns (and biases) are pre-scaled by 0.5 so the kernel can
    form sigmoid as 0.5*tanh(.)+0.5 from a single tanh pass."""
    H = whh_f.shape[1]
    Hc = 2 * H
    E = wih_f.shape[1]
    G = 4 * Hc

    wih_f_t = wih_f.T          # (E, 4H), columns ordered [i f g o]
    wih_b_t = wih_b.T
    whh_f_t = whh_f.T          # (H, 4H)
    whh_b_t = whh_b.T
    b_f = bih_f + bhh_f        # (4H,)
    b_b = bih_b + bhh_b

    def gate_cols(m, g):
        return m[:, g * H:(g + 1) * H]

    # Fused input projection weight (E, 8H) and bias (8H,).
    w_in = jnp.concatenate(
        [blk for g in range(4)
         for blk in (gate_cols(wih_f_t, g), gate_cols(wih_b_t, g))], axis=1)
    b_in = jnp.concatenate(
        [blk for g in range(4)
         for blk in (b_f[g * H:(g + 1) * H], b_b[g * H:(g + 1) * H])], axis=0)

    # Block-diagonal recurrent weight (2H, 8H): forward h feeds only forward
    # gate columns, backward h feeds only backward gate columns.
    Z = jnp.zeros((H, H), jnp.float32)
    row_f = jnp.concatenate(
        [blk for g in range(4) for blk in (gate_cols(whh_f_t, g), Z)], axis=1)
    row_b = jnp.concatenate(
        [blk for g in range(4) for blk in (Z, gate_cols(whh_b_t, g))], axis=1)
    whh = jnp.concatenate([row_f, row_b], axis=0)          # (2H, 8H)

    # 0.5 fold: sigmoid(z) = 0.5*tanh(z/2) + 0.5, so halve the i/f/o gate
    # columns (g candidate block stays at 1.0).  Applied consistently to
    # w_in, whh AND b_in.
    scale = jnp.concatenate(
        [jnp.full((Hc,), s, jnp.float32) for s in (0.5, 0.5, 1.0, 0.5)])   # (8H,)
    w_in = w_in * scale[None, :]
    whh = whh * scale[None, :]
    b_in = (b_in * scale).reshape(1, G)

    # Zero-pad the contraction dim E -> multiple of 128 (aligned MXU feed;
    # padded x columns hit zero weight rows, so results are unchanged).
    Ep = ((E + 127) // 128) * 128
    w_in = jnp.pad(w_in, ((0, Ep - E), (0, 0)))

    # Head weights: single w1 acting on the lane-concatenated [h_f | h_b].
    w1_t = w1.T                                            # (2H, Ho)
    b1_r = b1.reshape(1, -1)
    # Pad output lanes to a multiple of 128 for an unmasked lane-dense store.
    T = w2.shape[0]
    Tp = ((T + 127) // 128) * 128
    w2_t = jnp.pad(w2.T, ((0, 0), (0, Tp - T)))            # (Ho, Tp)
    b2_r = jnp.pad(b2, (0, Tp - T)).reshape(1, Tp)

    return (w_in, b_in, whh, w1_t, b1_r, w2_t, b2_r)


@functools.partial(jax.jit, static_argnames=("tag_size",))
def glove_blstm_forward(x, params, *, tag_size):
    """x: (B, S, E) float32 embeddings (batch of sentences); params from
    prepare_params().  Returns (B, S, tag_size)."""
    w_in, b_in, whh, w1_t, b1_r, w2_t, b2_r = params
    B, S, E = x.shape
    Ep, G = w_in.shape
    Hc = whh.shape[0]
    Ho = w1_t.shape[1]
    Tp = w2_t.shape[1]

    x_pad = jnp.pad(x, ((0, 0), (0, 0), (0, Ep - E)))

    const = lambda b: (0, 0)   # weights: same block for every sentence -> stay VMEM-resident
    out_pad = pl.pallas_call(
        glove_blstm_kernel,
        out_shape=jax.ShapeDtypeStruct((B, S, Tp), jnp.float32),
        grid=(B,),
        in_specs=[
            pl.BlockSpec((None, S, Ep), lambda b: (b, 0, 0)),   # x: one sentence per step
            pl.BlockSpec((Ep, G), const),                       # fused input weight
            pl.BlockSpec((1, G), const),                        # fused input bias
            pl.BlockSpec((Hc, G), const),                       # block-diag recurrent weight
            pl.BlockSpec((Hc, Ho), const),                      # hidden2tag weight
            pl.BlockSpec((1, Ho), const),                       # hidden2tag bias
            pl.BlockSpec((Ho, Tp), const),                      # hidden3tag weight (padded)
            pl.BlockSpec((1, Tp), const),                       # hidden3tag bias (padded)
        ],
        out_specs=pl.BlockSpec((None, S, Tp), lambda b: (b, 0, 0)),
        compiler_params=pltpu.CompilerParams(
            dimension_semantics=("parallel",)),                 # shard batch across TCs (v7x)
    )(x_pad, w_in, b_in, whh, w1_t, b1_r, w2_t, b2_r)
    return out_pad[..., :tag_size]


def reference_forward(x,
                      wih_f, whh_f, bih_f, bhh_f,
                      wih_b, whh_b, bih_b, bhh_b,
                      w1, b1, w2, b2):
    """Pure-JAX reference matching torch.nn.LSTM(bidirectional=True) semantics
    for one sentence (S, E)."""
    H = whh_f.shape[1]

    def run(xs, wih, whh, bih, bhh):
        def cell(carry, xt):
            h, c = carry
            gates = xt @ wih.T + bih + h @ whh.T + bhh
            i, f, g, o = jnp.split(gates, 4)
            i = jax.nn.sigmoid(i)
            f = jax.nn.sigmoid(f)
            g = jnp.tanh(g)
            o = jax.nn.sigmoid(o)
            c = f * c + i * g
            h = o * jnp.tanh(c)
            return (h, c), h
        init = (jnp.zeros((H,), jnp.float32), jnp.zeros((H,), jnp.float32))
        _, hs = lax.scan(cell, init, xs)
        return hs

    hf = run(x, wih_f, whh_f, bih_f, bhh_f)
    hb = run(x[::-1], wih_b, whh_b, bih_b, bhh_b)[::-1]
    lstm_out = jnp.concatenate([hf, hb], axis=-1)
    t1 = lstm_out @ w1.T + b1
    elu = jnp.where(t1 > 0, t1, jnp.exp(t1) - 1.0)
    return elu @ w2.T + b2


if __name__ == "__main__":
    # Small, forward-consistent shapes: batch of 4 sentences of 8 words,
    # embedding_dim=100 (as in the module), hidden_dim=32 (H=16/direction),
    # tag_size=8.
    B, S, E, hidden_dim, tag_size = 4, 8, 100, 32, 8
    H = hidden_dim // 2

    key = jax.random.PRNGKey(0)
    keys = jax.random.split(key, 13)

    def init(k, shape, scale=0.1):
        return (scale * jax.random.normal(k, shape)).astype(jnp.float32)

    # Simulated GloVe embedding lookup (scale=0.6 as in the OOV fallback path).
    x = (0.6 * jax.random.normal(keys[0], (B, S, E))).astype(jnp.float32)

    # Bidirectional LSTM parameters (PyTorch layout, gate order i,f,g,o).
    wih_f = init(keys[1], (4 * H, E))
    whh_f = init(keys[2], (4 * H, H))
    bih_f = init(keys[3], (4 * H,))
    bhh_f = init(keys[4], (4 * H,))
    wih_b = init(keys[5], (4 * H, E))
    whh_b = init(keys[6], (4 * H, H))
    bih_b = init(keys[7], (4 * H,))
    bhh_b = init(keys[8], (4 * H,))

    # hidden2tag: Linear(hidden_dim -> hidden_dim//2); hidden3tag: Linear(hidden_dim//2 -> tag_size)
    w1 = init(keys[9], (H, 2 * H))
    b1 = init(keys[10], (H,))
    w2 = init(keys[11], (tag_size, H))
    b2 = init(keys[12], (tag_size,))

    # One-time weight fusion/scaling/padding (hoisted out of the per-call path).
    params = prepare_params(wih_f, whh_f, bih_f, bhh_f,
                            wih_b, whh_b, bih_b, bhh_b,
                            w1, b1, w2, b2)

    out = glove_blstm_forward(x, params, tag_size=tag_size)
    out = jax.block_until_ready(out)

    ref = jax.vmap(
        lambda xb: reference_forward(xb,
                                     wih_f, whh_f, bih_f, bhh_f,
                                     wih_b, whh_b, bih_b, bhh_b,
                                     w1, b1, w2, b2))(x)
    assert out.shape == (B, S, tag_size)
    assert jnp.allclose(out, ref, atol=1e-4, rtol=1e-4), "mismatch vs JAX reference"
    print("KERNEL_OK")
</pallas_src>

<mosaic_0001>
module attributes {stable_mosaic.version = 11 : i64} {
  func.func @glove_blstm_kernel(%arg0: i32, %arg1: memref<1x8x128xf32, #tpu.memory_space<vmem>>, %arg2: memref<128x128xf32, #tpu.memory_space<vmem>>, %arg3: memref<1x128xf32, #tpu.memory_space<vmem>>, %arg4: memref<32x128xf32, #tpu.memory_space<vmem>>, %arg5: memref<32x16xf32, #tpu.memory_space<vmem>>, %arg6: memref<1x16xf32, #tpu.memory_space<vmem>>, %arg7: memref<16x128xf32, #tpu.memory_space<vmem>>, %arg8: memref<1x128xf32, #tpu.memory_space<vmem>>, %arg9: memref<1x8x128xf32, #tpu.memory_space<vmem>>) attributes {dimension_semantics = [#tpu.dimension_semantics<parallel>], iteration_bounds = array<i64: 4>, scalar_prefetch = 0 : i64, scratch_operands = 0 : i64, tpu.core_type = #tpu.core_type<tc>, window_params = [{transform_indices = @transform_0, window_bounds = array<i64: 1, 8, 128>}, {pipeline_mode = #tpu.pipeline_mode<synchronous>, transform_indices = @transform_1, window_bounds = array<i64: 128, 128>}, {pipeline_mode = #tpu.pipeline_mode<synchronous>, transform_indices = @transform_2, window_bounds = array<i64: 1, 128>}, {pipeline_mode = #tpu.pipeline_mode<synchronous>, transform_indices = @transform_3, window_bounds = array<i64: 32, 128>}, {pipeline_mode = #tpu.pipeline_mode<synchronous>, transform_indices = @transform_4, window_bounds = array<i64: 32, 16>}, {pipeline_mode = #tpu.pipeline_mode<synchronous>, transform_indices = @transform_5, window_bounds = array<i64: 1, 16>}, {pipeline_mode = #tpu.pipeline_mode<synchronous>, transform_indices = @transform_6, window_bounds = array<i64: 16, 128>}, {pipeline_mode = #tpu.pipeline_mode<synchronous>, transform_indices = @transform_7, window_bounds = array<i64: 1, 128>}, {transform_indices = @transform_8, window_bounds = array<i64: 1, 8, 128>}]} {
    %c0 = arith.constant 0 : index
    %c0_0 = arith.constant 0 : index
    %c0_1 = arith.constant 0 : index
    %0 = vector.load %arg1[%c0, %c0_0, %c0_1] : memref<1x8x128xf32, #tpu.memory_space<vmem>>, vector<1x8x128xf32>
    %1 = vector.shape_cast %0 : vector<1x8x128xf32> to vector<8x128xf32>
    %c0_2 = arith.constant 0 : index
    %c0_3 = arith.constant 0 : index
    %2 = vector.load %arg2[%c0_2, %c0_3] : memref<128x128xf32, #tpu.memory_space<vmem>>, vector<128x128xf32>
    %cst = arith.constant dense<0.000000e+00> : vector<8x128xf32>
    %3 = tpu.matmul %1, %2, %cst {dimension_numbers = #tpu.dot_dimension_numbers<[1], [0], [0], [1], [0, 0, 1, 1], [], []>} : vector<8x128xf32>, vector<128x128xf32>, vector<8x128xf32> -> vector<8x128xf32>
    %c0_4 = arith.constant 0 : index
    %c0_5 = arith.constant 0 : index
    %4 = vector.load %arg3[%c0_4, %c0_5] : memref<1x128xf32, #tpu.memory_space<vmem>>, vector<1x128xf32>
    %5 = vector.broadcast %4 : vector<1x128xf32> to vector<8x128xf32>
    %6 = arith.addf %3, %5 : vector<8x128xf32>
    %7 = tpu.iota {dimensions = array<i32: 1>} : vector<1x128xi32>
    %c32_i32 = arith.constant 32 : i32
    %c0_i32 = arith.constant 0 : i32
    %8 = arith.cmpi eq, %c32_i32, %c0_i32 : i32
    %c1_i32 = arith.constant 1 : i32
    %9 = arith.select %8, %c1_i32, %c32_i32 : i32
    %10 = vector.broadcast %9 : i32 to vector<1x128xi32>
    %11 = arith.remsi %7, %10 : vector<1x128xi32>
    %c0_i32_6 = arith.constant 0 : i32
    %12 = vector.broadcast %c0_i32_6 : i32 to vector<1x128xi32>
    %13 = arith.cmpi ne, %11, %12 : vector<1x128xi32>
    %c0_i32_7 = arith.constant 0 : i32
    %14 = vector.broadcast %c0_i32_7 : i32 to vector<1x128xi32>
    %15 = arith.cmpi slt, %11, %14 : vector<1x128xi32>
    %c0_i32_8 = arith.constant 0 : i32
    %16 = arith.cmpi slt, %9, %c0_i32_8 : i32
    %17 = vector.broadcast %16 : i1 to vector<1x128xi1>
    %18 = vector.broadcast %17 : vector<1x128xi1> to vector<1x128xi1>
    %19 = arith.xori %15, %18 : vector<1x128xi1>
    %20 = arith.andi %19, %13 : vector<1x128xi1>
    %21 = vector.broadcast %9 : i32 to vector<1x128xi32>
    %22 = arith.addi %11, %21 : vector<1x128xi32>
    %23 = arith.select %20, %22, %11 : vector<1x128xi1>, vector<1x128xi32>
    %c16_i32 = arith.constant 16 : i32
    %24 = vector.broadcast %c16_i32 : i32 to vector<1x128xi32>
    %25 = arith.cmpi slt, %23, %24 : vector<1x128xi32>
    %c64_i32 = arith.constant 64 : i32
    %26 = vector.broadcast %c64_i32 : i32 to vector<1x128xi32>
    %27 = arith.cmpi sge, %7, %26 : vector<1x128xi32>
    %c96_i32 = arith.constant 96 : i32
    %28 = vector.broadcast %c96_i32 : i32 to vector<1x128xi32>
    %29 = arith.cmpi slt, %7, %28 : vector<1x128xi32>
    %30 = arith.andi %27, %29 : vector<1x128xi1>
    %31 = vector.extract_strided_slice %6 {offsets = [7, 0], sizes = [1, 128], strides = [1, 1]} : vector<8x128xf32> to vector<1x128xf32>
    %32 = vector.extract_strided_slice %6 {offsets = [6, 0], sizes = [1, 128], strides = [1, 1]} : vector<8x128xf32> to vector<1x128xf32>
    %33 = vector.extract_strided_slice %6 {offsets = [5, 0], sizes = [1, 128], strides = [1, 1]} : vector<8x128xf32> to vector<1x128xf32>
    %34 = vector.extract_strided_slice %6 {offsets = [4, 0], sizes = [1, 128], strides = [1, 1]} : vector<8x128xf32> to vector<1x128xf32>
    %35 = vector.extract_strided_slice %6 {offsets = [3, 0], sizes = [1, 128], strides = [1, 1]} : vector<8x128xf32> to vector<1x128xf32>
    %36 = vector.extract_strided_slice %6 {offsets = [2, 0], sizes = [1, 128], strides = [1, 1]} : vector<8x128xf32> to vector<1x128xf32>
    %37 = vector.extract_strided_slice %6 {offsets = [1, 0], sizes = [1, 128], strides = [1, 1]} : vector<8x128xf32> to vector<1x128xf32>
    %38 = vector.extract_strided_slice %6 {offsets = [0, 0], sizes = [1, 128], strides = [1, 1]} : vector<8x128xf32> to vector<1x128xf32>
    %39 = tpu.concatenate %31, %32, %33, %34, %35, %36, %37, %38 in 0 : vector<1x128xf32>, vector<1x128xf32>, vector<1x128xf32>, vector<1x128xf32>, vector<1x128xf32>, vector<1x128xf32>, vector<1x128xf32>, vector<1x128xf32> -> vector<8x128xf32>
    %40 = vector.shape_cast %25 : vector<1x128xi1> to vector<1x128xi1>
    %41 = vector.broadcast %40 : vector<1x128xi1> to vector<8x128xi1>
    %42 = arith.select %41, %6, %39 : vector<8x128xi1>, vector<8x128xf32>
    %c0_9 = arith.constant 0 : index
    %c0_10 = arith.constant 0 : index
    %43 = vector.load %arg4[%c0_9, %c0_10] : memref<32x128xf32, #tpu.memory_space<vmem>>, vector<32x128xf32>
    %cst_11 = arith.constant 0.000000e+00 : f32
    %44 = vector.broadcast %cst_11 : f32 to vector<1x32xf32>
    %cst_12 = arith.constant 0.000000e+00 : f32
    %45 = vector.broadcast %cst_12 : f32 to vector<1x32xf32>
    %46 = vector.extract_strided_slice %42 {offsets = [0, 0], sizes = [1, 128], strides = [1, 1]} : vector<8x128xf32> to vector<1x128xf32>
    %cst_13 = arith.constant dense<0.000000e+00> : vector<1x128xf32>
    %47 = tpu.matmul %44, %43, %cst_13 {dimension_numbers = #tpu.dot_dimension_numbers<[1], [0], [0], [1], [0, 0, 1, 1], [], []>} : vector<1x32xf32>, vector<32x128xf32>, vector<1x128xf32> -> vector<1x128xf32>
    %48 = arith.addf %46, %47 : vector<1x128xf32>
    %49 = math.tanh %48 : vector<1x128xf32>
    %cst_14 = arith.constant 5.000000e-01 : f32
    %50 = vector.broadcast %cst_14 : f32 to vector<1x128xf32>
    %51 = arith.mulf %50, %49 : vector<1x128xf32>
    %cst_15 = arith.constant 5.000000e-01 : f32
    %52 = vector.broadcast %cst_15 : f32 to vector<1x128xf32>
    %53 = arith.addf %51, %52 : vector<1x128xf32>
    %54 = arith.select %30, %49, %53 : vector<1x128xi1>, vector<1x128xf32>
    %55 = vector.extract_strided_slice %54 {offsets = [0, 0], sizes = [1, 32], strides = [1, 1]} : vector<1x128xf32> to vector<1x32xf32>
    %56 = vector.extract_strided_slice %54 {offsets = [0, 32], sizes = [1, 32], strides = [1, 1]} : vector<1x128xf32> to vector<1x32xf32>
    %57 = vector.extract_strided_slice %54 {offsets = [0, 64], sizes = [1, 32], strides = [1, 1]} : vector<1x128xf32> to vector<1x32xf32>
    %58 = vector.extract_strided_slice %54 {offsets = [0, 96], sizes = [1, 32], strides = [1, 1]} : vector<1x128xf32> to vector<1x32xf32>
    %59 = arith.mulf %56, %45 : vector<1x32xf32>
    %60 = arith.mulf %55, %57 : vector<1x32xf32>
    %61 = arith.addf %59, %60 : vector<1x32xf32>
    %62 = math.tanh %61 : vector<1x32xf32>
    %63 = arith.mulf %58, %62 : vector<1x32xf32>
    %64 = vector.extract_strided_slice %42 {offsets = [1, 0], sizes = [1, 128], strides = [1, 1]} : vector<8x128xf32> to vector<1x128xf32>
    %cst_16 = arith.constant dense<0.000000e+00> : vector<1x128xf32>
    %65 = tpu.matmul %63, %43, %cst_16 {dimension_numbers = #tpu.dot_dimension_numbers<[1], [0], [0], [1], [0, 0, 1, 1], [], []>} : vector<1x32xf32>, vector<32x128xf32>, vector<1x128xf32> -> vector<1x128xf32>
    %66 = arith.addf %64, %65 : vector<1x128xf32>
    %67 = math.tanh %66 : vector<1x128xf32>
    %cst_17 = arith.constant 5.000000e-01 : f32
    %68 = vector.broadcast %cst_17 : f32 to vector<1x128xf32>
    %69 = arith.mulf %68, %67 : vector<1x128xf32>
    %cst_18 = arith.constant 5.000000e-01 : f32
    %70 = vector.broadcast %cst_18 : f32 to vector<1x128xf32>
    %71 = arith.addf %69, %70 : vector<1x128xf32>
    %72 = arith.select %30, %67, %71 : vector<1x128xi1>, vector<1x128xf32>
    %73 = vector.extract_strided_slice %72 {offsets = [0, 0], sizes = [1, 32], strides = [1, 1]} : vector<1x128xf32> to vector<1x32xf32>
    %74 = vector.extract_strided_slice %72 {offsets = [0, 32], sizes = [1, 32], strides = [1, 1]} : vector<1x128xf32> to vector<1x32xf32>
    %75 = vector.extract_strided_slice %72 {offsets = [0, 64], sizes = [1, 32], strides = [1, 1]} : vector<1x128xf32> to vector<1x32xf32>
    %76 = vector.extract_strided_slice %72 {offsets = [0, 96], sizes = [1, 32], strides = [1, 1]} : vector<1x128xf32> to vector<1x32xf32>
    %77 = arith.mulf %74, %61 : vector<1x32xf32>
    %78 = arith.mulf %73, %75 : vector<1x32xf32>
    %79 = arith.addf %77, %78 : vector<1x32xf32>
    %80 = math.tanh %79 : vector<1x32xf32>
    %81 = arith.mulf %76, %80 : vector<1x32xf32>
    %82 = vector.extract_strided_slice %42 {offsets = [2, 0], sizes = [1, 128], strides = [1, 1]} : vector<8x128xf32> to vector<1x128xf32>
    %cst_19 = arith.constant dense<0.000000e+00> : vector<1x128xf32>
    %83 = tpu.matmul %81, %43, %cst_19 {dimension_numbers = #tpu.dot_dimension_numbers<[1], [0], [0], [1], [0, 0, 1, 1], [], []>} : vector<1x32xf32>, vector<32x128xf32>, vector<1x128xf32> -> vector<1x128xf32>
    %84 = arith.addf %82, %83 : vector<1x128xf32>
    %85 = math.tanh %84 : vector<1x128xf32>
    %cst_20 = arith.constant 5.000000e-01 : f32
    %86 = vector.broadcast %cst_20 : f32 to vector<1x128xf32>
    %87 = arith.mulf %86, %85 : vector<1x128xf32>
    %cst_21 = arith.constant 5.000000e-01 : f32
    %88 = vector.broadcast %cst_21 : f32 to vector<1x128xf32>
    %89 = arith.addf %87, %88 : vector<1x128xf32>
    %90 = arith.select %30, %85, %89 : vector<1x128xi1>, vector<1x128xf32>
    %91 = vector.extract_strided_slice %90 {offsets = [0, 0], sizes = [1, 32], strides = [1, 1]} : vector<1x128xf32> to vector<1x32xf32>
    %92 = vector.extract_strided_slice %90 {offsets = [0, 32], sizes = [1, 32], strides = [1, 1]} : vector<1x128xf32> to vector<1x32xf32>
    %93 = vector.extract_strided_slice %90 {offsets = [0, 64], sizes = [1, 32], strides = [1, 1]} : vector<1x128xf32> to vector<1x32xf32>
    %94 = vector.extract_strided_slice %90 {offsets = [0, 96], sizes = [1, 32], strides = [1, 1]} : vector<1x128xf32> to vector<1x32xf32>
    %95 = arith.mulf %92, %79 : vector<1x32xf32>
    %96 = arith.mulf %91, %93 : vector<1x32xf32>
    %97 = arith.addf %95, %96 : vector<1x32xf32>
    %98 = math.tanh %97 : vector<1x32xf32>
    %99 = arith.mulf %94, %98 : vector<1x32xf32>
    %100 = vector.extract_strided_slice %42 {offsets = [3, 0], sizes = [1, 128], strides = [1, 1]} : vector<8x128xf32> to vector<1x128xf32>
    %cst_22 = arith.constant dense<0.000000e+00> : vector<1x128xf32>
    %101 = tpu.matmul %99, %43, %cst_22 {dimension_numbers = #tpu.dot_dimension_numbers<[1], [0], [0], [1], [0, 0, 1, 1], [], []>} : vector<1x32xf32>, vector<32x128xf32>, vector<1x128xf32> -> vector<1x128xf32>
    %102 = arith.addf %100, %101 : vector<1x128xf32>
    %103 = math.tanh %102 : vector<1x128xf32>
    %cst_23 = arith.constant 5.000000e-01 : f32
    %104 = vector.broadcast %cst_23 : f32 to vector<1x128xf32>
    %105 = arith.mulf %104, %103 : vector<1x128xf32>
    %cst_24 = arith.constant 5.000000e-01 : f32
    %106 = vector.broadcast %cst_24 : f32 to vector<1x128xf32>
    %107 = arith.addf %105, %106 : vector<1x128xf32>
    %108 = arith.select %30, %103, %107 : vector<1x128xi1>, vector<1x128xf32>
    %109 = vector.extract_strided_slice %108 {offsets = [0, 0], sizes = [1, 32], strides = [1, 1]} : vector<1x128xf32> to vector<1x32xf32>
    %110 = vector.extract_strided_slice %108 {offsets = [0, 32], sizes = [1, 32], strides = [1, 1]} : vector<1x128xf32> to vector<1x32xf32>
    %111 = vector.extract_strided_slice %108 {offsets = [0, 64], sizes = [1, 32], strides = [1, 1]} : vector<1x128xf32> to vector<1x32xf32>
    %112 = vector.extract_strided_slice %108 {offsets = [0, 96], sizes = [1, 32], strides = [1, 1]} : vector<1x128xf32> to vector<1x32xf32>
    %113 = arith.mulf %110, %97 : vector<1x32xf32>
    %114 = arith.mulf %109, %111 : vector<1x32xf32>
    %115 = arith.addf %113, %114 : vector<1x32xf32>
    %116 = math.tanh %115 : vector<1x32xf32>
    %117 = arith.mulf %112, %116 : vector<1x32xf32>
    %118 = vector.extract_strided_slice %42 {offsets = [4, 0], sizes = [1, 128], strides = [1, 1]} : vector<8x128xf32> to vector<1x128xf32>
    %cst_25 = arith.constant dense<0.000000e+00> : vector<1x128xf32>
    %119 = tpu.matmul %117, %43, %cst_25 {dimension_numbers = #tpu.dot_dimension_numbers<[1], [0], [0], [1], [0, 0, 1, 1], [], []>} : vector<1x32xf32>, vector<32x128xf32>, vector<1x128xf32> -> vector<1x128xf32>
    %120 = arith.addf %118, %119 : vector<1x128xf32>
    %121 = math.tanh %120 : vector<1x128xf32>
    %cst_26 = arith.constant 5.000000e-01 : f32
    %122 = vector.broadcast %cst_26 : f32 to vector<1x128xf32>
    %123 = arith.mulf %122, %121 : vector<1x128xf32>
    %cst_27 = arith.constant 5.000000e-01 : f32
    %124 = vector.broadcast %cst_27 : f32 to vector<1x128xf32>
    %125 = arith.addf %123, %124 : vector<1x128xf32>
    %126 = arith.select %30, %121, %125 : vector<1x128xi1>, vector<1x128xf32>
    %127 = vector.extract_strided_slice %126 {offsets = [0, 0], sizes = [1, 32], strides = [1, 1]} : vector<1x128xf32> to vector<1x32xf32>
    %128 = vector.extract_strided_slice %126 {offsets = [0, 32], sizes = [1, 32], strides = [1, 1]} : vector<1x128xf32> to vector<1x32xf32>
    %129 = vector.extract_strided_slice %126 {offsets = [0, 64], sizes = [1, 32], strides = [1, 1]} : vector<1x128xf32> to vector<1x32xf32>
    %130 = vector.extract_strided_slice %126 {offsets = [0, 96], sizes = [1, 32], strides = [1, 1]} : vector<1x128xf32> to vector<1x32xf32>
    %131 = arith.mulf %128, %115 : vector<1x32xf32>
    %132 = arith.mulf %127, %129 : vector<1x32xf32>
    %133 = arith.addf %131, %132 : vector<1x32xf32>
    %134 = math.tanh %133 : vector<1x32xf32>
    %135 = arith.mulf %130, %134 : vector<1x32xf32>
    %136 = vector.extract_strided_slice %42 {offsets = [5, 0], sizes = [1, 128], strides = [1, 1]} : vector<8x128xf32> to vector<1x128xf32>
    %cst_28 = arith.constant dense<0.000000e+00> : vector<1x128xf32>
    %137 = tpu.matmul %135, %43, %cst_28 {dimension_numbers = #tpu.dot_dimension_numbers<[1], [0], [0], [1], [0, 0, 1, 1], [], []>} : vector<1x32xf32>, vector<32x128xf32>, vector<1x128xf32> -> vector<1x128xf32>
    %138 = arith.addf %136, %137 : vector<1x128xf32>
    %139 = math.tanh %138 : vector<1x128xf32>
    %cst_29 = arith.constant 5.000000e-01 : f32
    %140 = vector.broadcast %cst_29 : f32 to vector<1x128xf32>
    %141 = arith.mulf %140, %139 : vector<1x128xf32>
    %cst_30 = arith.constant 5.000000e-01 : f32
    %142 = vector.broadcast %cst_30 : f32 to vector<1x128xf32>
    %143 = arith.addf %141, %142 : vector<1x128xf32>
    %144 = arith.select %30, %139, %143 : vector<1x128xi1>, vector<1x128xf32>
    %145 = vector.extract_strided_slice %144 {offsets = [0, 0], sizes = [1, 32], strides = [1, 1]} : vector<1x128xf32> to vector<1x32xf32>
    %146 = vector.extract_strided_slice %144 {offsets = [0, 32], sizes = [1, 32], strides = [1, 1]} : vector<1x128xf32> to vector<1x32xf32>
    %147 = vector.extract_strided_slice %144 {offsets = [0, 64], sizes = [1, 32], strides = [1, 1]} : vector<1x128xf32> to vector<1x32xf32>
    %148 = vector.extract_strided_slice %144 {offsets = [0, 96], sizes = [1, 32], strides = [1, 1]} : vector<1x128xf32> to vector<1x32xf32>
    %149 = arith.mulf %146, %133 : vector<1x32xf32>
    %150 = arith.mulf %145, %147 : vector<1x32xf32>
    %151 = arith.addf %149, %150 : vector<1x32xf32>
    %152 = math.tanh %151 : vector<1x32xf32>
    %153 = arith.mulf %148, %152 : vector<1x32xf32>
    %154 = vector.extract_strided_slice %42 {offsets = [6, 0], sizes = [1, 128], strides = [1, 1]} : vector<8x128xf32> to vector<1x128xf32>
    %cst_31 = arith.constant dense<0.000000e+00> : vector<1x128xf32>
    %155 = tpu.matmul %153, %43, %cst_31 {dimension_numbers = #tpu.dot_dimension_numbers<[1], [0], [0], [1], [0, 0, 1, 1], [], []>} : vector<1x32xf32>, vector<32x128xf32>, vector<1x128xf32> -> vector<1x128xf32>
    %156 = arith.addf %154, %155 : vector<1x128xf32>
    %157 = math.tanh %156 : vector<1x128xf32>
    %cst_32 = arith.constant 5.000000e-01 : f32
    %158 = vector.broadcast %cst_32 : f32 to vector<1x128xf32>
    %159 = arith.mulf %158, %157 : vector<1x128xf32>
    %cst_33 = arith.constant 5.000000e-01 : f32
    %160 = vector.broadcast %cst_33 : f32 to vector<1x128xf32>
    %161 = arith.addf %159, %160 : vector<1x128xf32>
    %162 = arith.select %30, %157, %161 : vector<1x128xi1>, vector<1x128xf32>
    %163 = vector.extract_strided_slice %162 {offsets = [0, 0], sizes = [1, 32], strides = [1, 1]} : vector<1x128xf32> to vector<1x32xf32>
    %164 = vector.extract_strided_slice %162 {offsets = [0, 32], sizes = [1, 32], strides = [1, 1]} : vector<1x128xf32> to vector<1x32xf32>
    %165 = vector.extract_strided_slice %162 {offsets = [0, 64], sizes = [1, 32], strides = [1, 1]} : vector<1x128xf32> to vector<1x32xf32>
    %166 = vector.extract_strided_slice %162 {offsets = [0, 96], sizes = [1, 32], strides = [1, 1]} : vector<1x128xf32> to vector<1x32xf32>
    %167 = arith.mulf %164, %151 : vector<1x32xf32>
    %168 = arith.mulf %163, %165 : vector<1x32xf32>
    %169 = arith.addf %167, %168 : vector<1x32xf32>
    %170 = math.tanh %169 : vector<1x32xf32>
    %171 = arith.mulf %166, %170 : vector<1x32xf32>
    %172 = vector.extract_strided_slice %42 {offsets = [7, 0], sizes = [1, 128], strides = [1, 1]} : vector<8x128xf32> to vector<1x128xf32>
    %cst_34 = arith.constant dense<0.000000e+00> : vector<1x128xf32>
    %173 = tpu.matmul %171, %43, %cst_34 {dimension_numbers = #tpu.dot_dimension_numbers<[1], [0], [0], [1], [0, 0, 1, 1], [], []>} : vector<1x32xf32>, vector<32x128xf32>, vector<1x128xf32> -> vector<1x128xf32>
    %174 = arith.addf %172, %173 : vector<1x128xf32>
    %175 = math.tanh %174 : vector<1x128xf32>
    %cst_35 = arith.constant 5.000000e-01 : f32
    %176 = vector.broadcast %cst_35 : f32 to vector<1x128xf32>
    %177 = arith.mulf %176, %175 : vector<1x128xf32>
    %cst_36 = arith.constant 5.000000e-01 : f32
    %178 = vector.broadcast %cst_36 : f32 to vector<1x128xf32>
    %179 = arith.addf %177, %178 : vector<1x128xf32>
    %180 = arith.select %30, %175, %179 : vector<1x128xi1>, vector<1x128xf32>
    %181 = vector.extract_strided_slice %180 {offsets = [0, 0], sizes = [1, 32], strides = [1, 1]} : vector<1x128xf32> to vector<1x32xf32>
    %182 = vector.extract_strided_slice %180 {offsets = [0, 32], sizes = [1, 32], strides = [1, 1]} : vector<1x128xf32> to vector<1x32xf32>
    %183 = vector.extract_strided_slice %180 {offsets = [0, 64], sizes = [1, 32], strides = [1, 1]} : vector<1x128xf32> to vector<1x32xf32>
    %184 = vector.extract_strided_slice %180 {offsets = [0, 96], sizes = [1, 32], strides = [1, 1]} : vector<1x128xf32> to vector<1x32xf32>
    %185 = arith.mulf %182, %169 : vector<1x32xf32>
    %186 = arith.mulf %181, %183 : vector<1x32xf32>
    %187 = arith.addf %185, %186 : vector<1x32xf32>
    %188 = math.tanh %187 : vector<1x32xf32>
    %189 = arith.mulf %184, %188 : vector<1x32xf32>
    %190 = tpu.concatenate %63, %81, %99, %117, %135, %153, %171, %189 in 0 : vector<1x32xf32>, vector<1x32xf32>, vector<1x32xf32>, vector<1x32xf32>, vector<1x32xf32>, vector<1x32xf32>, vector<1x32xf32>, vector<1x32xf32> -> vector<8x32xf32>
    %191 = tpu.concatenate %189, %171, %153, %135, %117, %99, %81, %63 in 0 : vector<1x32xf32>, vector<1x32xf32>, vector<1x32xf32>, vector<1x32xf32>, vector<1x32xf32>, vector<1x32xf32>, vector<1x32xf32>, vector<1x32xf32> -> vector<8x32xf32>
    %192 = tpu.iota {dimensions = array<i32: 1>} : vector<1x32xi32>
    %c16_i32_37 = arith.constant 16 : i32
    %193 = vector.broadcast %c16_i32_37 : i32 to vector<1x32xi32>
    %194 = arith.cmpi slt, %192, %193 : vector<1x32xi32>
    %195 = vector.shape_cast %194 : vector<1x32xi1> to vector<1x32xi1>
    %196 = vector.broadcast %195 : vector<1x32xi1> to vector<8x32xi1>
    %197 = arith.select %196, %190, %191 : vector<8x32xi1>, vector<8x32xf32>
    %c0_38 = arith.constant 0 : index
    %c0_39 = arith.constant 0 : index
    %198 = vector.load %arg5[%c0_38, %c0_39] : memref<32x16xf32, #tpu.memory_space<vmem>>, vector<32x16xf32>
    %cst_40 = arith.constant dense<0.000000e+00> : vector<8x16xf32>
    %199 = tpu.matmul %197, %198, %cst_40 {dimension_numbers = #tpu.dot_dimension_numbers<[1], [0], [0], [1], [0, 0, 1, 1], [], []>} : vector<8x32xf32>, vector<32x16xf32>, vector<8x16xf32> -> vector<8x16xf32>
    %c0_41 = arith.constant 0 : index
    %c0_42 = arith.constant 0 : index
    %200 = vector.load %arg6[%c0_41, %c0_42] : memref<1x16xf32, #tpu.memory_space<vmem>>, vector<1x16xf32>
    %201 = vector.broadcast %200 : vector<1x16xf32> to vector<8x16xf32>
    %202 = arith.addf %199, %201 : vector<8x16xf32>
    %cst_43 = arith.constant 0.000000e+00 : f32
    %203 = vector.broadcast %cst_43 : f32 to vector<8x16xf32>
    %204 = arith.cmpf ogt, %202, %203 : vector<8x16xf32>
    %cst_44 = arith.constant 0.000000e+00 : f32
    %205 = vector.broadcast %cst_44 : f32 to vector<8x16xf32>
    %206 = arith.minimumf %202, %205 : vector<8x16xf32>
    %207 = math.exp %206 : vector<8x16xf32>
    %cst_45 = arith.constant 1.000000e+00 : f32
    %208 = vector.broadcast %cst_45 : f32 to vector<8x16xf32>
    %209 = arith.subf %207, %208 : vector<8x16xf32>
    %210 = arith.select %204, %202, %209 : vector<8x16xi1>, vector<8x16xf32>
    %c0_46 = arith.constant 0 : index
    %c0_47 = arith.constant 0 : index
    %211 = vector.load %arg7[%c0_46, %c0_47] : memref<16x128xf32, #tpu.memory_space<vmem>>, vector<16x128xf32>
    %cst_48 = arith.constant dense<0.000000e+00> : vector<8x128xf32>
    %212 = tpu.matmul %210, %211, %cst_48 {dimension_numbers = #tpu.dot_dimension_numbers<[1], [0], [0], [1], [0, 0, 1, 1], [], []>} : vector<8x16xf32>, vector<16x128xf32>, vector<8x128xf32> -> vector<8x128xf32>
    %c0_49 = arith.constant 0 : index
    %c0_50 = arith.constant 0 : index
    %213 = vector.load %arg8[%c0_49, %c0_50] : memref<1x128xf32, #tpu.memory_space<vmem>>, vector<1x128xf32>
    %214 = vector.broadcast %213 : vector<1x128xf32> to vector<8x128xf32>
    %215 = arith.addf %212, %214 : vector<8x128xf32>
    %c0_51 = arith.constant 0 : index
    %c0_52 = arith.constant 0 : index
    %c0_53 = arith.constant 0 : index
    %216 = vector.load %arg9[%c0_51, %c0_52, %c0_53] : memref<1x8x128xf32, #tpu.memory_space<vmem>>, vector<1x8x128xf32>
    %217 = vector.shape_cast %216 : vector<1x8x128xf32> to vector<8x128xf32>
    %218 = vector.shape_cast %215 : vector<8x128xf32> to vector<1x8x128xf32>
    tpu.vector_store %arg9[%c0_51, %c0_52, %c0_53], %218 {strides = array<i32>} : memref<1x8x128xf32, #tpu.memory_space<vmem>>, vector<1x8x128xf32>,
    return
  }
  func.func @transform_0(%arg0: i32) -> (i32, i32, i32) {
    %c0_i32 = arith.constant 0 : i32
    %c0_i32_0 = arith.constant 0 : i32
    %c0_i32_1 = arith.constant 0 : i32
    return %arg0, %c0_i32, %c0_i32_0 : i32, i32, i32
  }
  func.func @transform_1(%arg0: i32) -> (i32, i32) {
    %c0_i32 = arith.constant 0 : i32
    %c0_i32_0 = arith.constant 0 : i32
    %c0_i32_1 = arith.constant 0 : i32
    return %c0_i32, %c0_i32_0 : i32, i32
  }
  func.func @transform_2(%arg0: i32) -> (i32, i32) {
    %c0_i32 = arith.constant 0 : i32
    %c0_i32_0 = arith.constant 0 : i32
    %c0_i32_1 = arith.constant 0 : i32
    return %c0_i32, %c0_i32_0 : i32, i32
  }
  func.func @transform_3(%arg0: i32) -> (i32, i32) {
    %c0_i32 = arith.constant 0 : i32
    %c0_i32_0 = arith.constant 0 : i32
    %c0_i32_1 = arith.constant 0 : i32
    return %c0_i32, %c0_i32_0 : i32, i32
  }
  func.func @transform_4(%arg0: i32) -> (i32, i32) {
    %c0_i32 = arith.constant 0 : i32
    %c0_i32_0 = arith.constant 0 : i32
    %c0_i32_1 = arith.constant 0 : i32
    return %c0_i32, %c0_i32_0 : i32, i32
  }
  func.func @transform_5(%arg0: i32) -> (i32, i32) {
    %c0_i32 = arith.constant 0 : i32
    %c0_i32_0 = arith.constant 0 : i32
    %c0_i32_1 = arith.constant 0 : i32
    return %c0_i32, %c0_i32_0 : i32, i32
  }
  func.func @transform_6(%arg0: i32) -> (i32, i32) {
    %c0_i32 = arith.constant 0 : i32
    %c0_i32_0 = arith.constant 0 : i32
    %c0_i32_1 = arith.constant 0 : i32
    return %c0_i32, %c0_i32_0 : i32, i32
  }
  func.func @transform_7(%arg0: i32) -> (i32, i32) {
    %c0_i32 = arith.constant 0 : i32
    %c0_i32_0 = arith.constant 0 : i32
    %c0_i32_1 = arith.constant 0 : i32
    return %c0_i32, %c0_i32_0 : i32, i32
  }
  func.func @transform_8(%arg0: i32) -> (i32, i32, i32) {
    %c0_i32 = arith.constant 0 : i32
    %c0_i32_0 = arith.constant 0 : i32
    %c0_i32_1 = arith.constant 0 : i32
    return %arg0, %c0_i32, %c0_i32_0 : i32, i32, i32
  }
}

</mosaic_0001>

<llo_original>
// kernel: glove_blstm_forward.1
$region0: #{glove_blstm_forward.1}
  #allocation0 [shape = 'u32[]', space=smem, size = 0x4, offset = 0x4, fixed_abs, tag = 'smem constant byte address 0x4 - core index']
  #allocation1 [shape = 'u32[144,128]{1,0:T(1,128)}', space=vmem, size = 0x12000, scoped, tag = 'internal scratch']
  %s0 = inlined_call_operand.vmem [shape: f32[4,8,128], index: 0, kind: input, shape index: {}]
  %s1 = inlined_call_operand.hbm [shape: f32[128,128], index: 1, kind: input, shape index: {}]
  %s2 = inlined_call_operand.vmem [shape: f32[1,128], index: 2, kind: input, shape index: {}]
  %s3 = inlined_call_operand.vmem [shape: f32[32,128], index: 3, kind: input, shape index: {}]
  %s4 = inlined_call_operand.vmem [shape: f32[32,16], index: 4, kind: input, shape index: {}]
  %s5 = inlined_call_operand.vmem [shape: f32[1,16], index: 5, kind: input, shape index: {}]
  %s6 = inlined_call_operand.vmem [shape: f32[16,128], index: 6, kind: input, shape index: {}]
  %s7 = inlined_call_operand.vmem [shape: f32[1,128], index: 7, kind: input, shape index: {}]
  %s8 = inlined_call_operand.hbm [shape: f32[4,8,128], index: 8, kind: output, shape index: {}]
  %s9 = sld [smem:[#allocation0]]
  $region69: #{glove_blstm_forward.1} parent=0
    _
  %s11 = ssub.s32 1, %s9
  %s12 = scalar_select 0, %s11, %s9
  $region1: #{glove_blstm_forward.1} parent=0
    #allocation2 [shape = 'u8[65536]{0}', space=vmem, size = 0x10000, scoped, tag = 'input window, operand 1, single buffered']
    #allocation3 [shape = 's32[2]{0}', space=sflag, size = 0x8, scoped, tag = 'scoped memory for glove_blstm_forward.1']
    #allocation4 [shape = 's32[2]{0}', space=sflag, size = 0x8, scoped, tag = 'scoped memory for glove_blstm_forward.1']
    #allocation5 [shape = 'u8[8192]{0}', space=vmem, size = 0x2000, scoped, tag = 'output window, operand 0']
    %13 = vsyncpa [#allocation3], 0
    %14 = vsyncpa [#allocation4], 0
    %s15 = scalar_lea.sflag [#allocation4], 1
    %16 = vsyncpa %s15, 0
    loop: start=0, step=1, limit=6
    $region2: #{glove_blstm_forward.1} parent=1 // loop_pre_header
      _
    $region3: #{glove_blstm_forward.1} parent=1 // loop_header
      %s18 = sphi 0, %s22
      %p19 = scmp.ge.s32.totalorder %s18, 6
      %s28 = sphi 0, %s30
      %s31 = sphi 0, %s28
      %s32 = sphi 0, %s31
      %s48 = sphi 0, %s32
      %s52 = sphi 0, %s52
      %s54 = sphi 0, %s52
      %s55 = sphi 0, %s54
      %s69 = sphi 0, %s55
      %s73 = sphi 0, %s73
      %s75 = sphi 0, %s73
      %s76 = sphi 0, %s75
      %s90 = sphi 0, %s76
      %s94 = sphi 0, %s94
      %s96 = sphi 0, %s94
      %s97 = sphi 0, %s96
      %s111 = sphi 0, %s97
      %s115 = sphi 0, %s115
      %s117 = sphi 0, %s115
      %s118 = sphi 0, %s117
      %s132 = sphi 0, %s118
      %s136 = sphi 0, %s136
      %s138 = sphi 0, %s136
      %s139 = sphi 0, %s138
      %s153 = sphi 0, %s139
      %s157 = sphi 0, %s157
      %s159 = sphi 0, %s157
      %s160 = sphi 0, %s159
      %s174 = sphi 0, %s160
      %s178 = sphi 0, %s178
      %s180 = sphi 0, %s178
      %s181 = sphi 0, %s180
      %s195 = sphi 0, %s181
      %s201 = sphi 0, %s203
      %s204 = sphi 0, %s201
      %s205 = sphi 0, %s204
      %s221 = sphi 0, %s205
    $region4: #{glove_blstm_forward.1} parent=1 // loop_header_branch
      %21 = sbr.rel (%p19) target = $region8
    $region5: #{glove_blstm_forward.1} parent=1 // loop_body
      %s23 = ssub.s32 %s18, 1
      %s24 = ssub.s32 %s18, 2
      %s25 = sadd.s32 %s18, 1
      %s26 = ssub.s32 %s18, %s25
      %p27 = scmp.eq.s32.totalorder %s26, 0
      %s29 = sadd.s32 %s28, 1
      %s30 = scalar_select %p27, %s28, %s29
      %p33 = pneg %p27
      %p34 = scmp.eq.s32.totalorder %s18, 3
      %p35 = por %p33, %p34
      %p36 = scmp.ne.s32.totalorder %s28, %s31
      %p37 = scmp.eq.s32.totalorder %s18, 0
      %p38 = por %p36, %p37
      %p39 = scmp.ne.s32.totalorder %s28, %s31
      %p40 = scmp.eq.s32.totalorder %s23, 3
      %p41 = por %p39, %p40
      %p42 = scmp.ne.s32.totalorder %s31, %s32
      %p43 = scmp.eq.s32.totalorder %s23, 0
      %p44 = por %p42, %p43
      %p45 = scmp.ne.s32.totalorder %s31, %s32
      %p46 = scmp.eq.s32.totalorder %s24, 3
      %p47 = por %p45, %p46
      %p49 = scmp.ne.s32.totalorder %s32, %s48
      %p50 = scmp.eq.s32.totalorder %s24, 0
      %p51 = por %p49, %p50
      %s53 = sadd.s32 %s52, 1
      %p56 = scmp.eq.s32.totalorder %s18, 3
      %p57 = scmp.ne.s32.totalorder %s52, %s54
      %p58 = scmp.eq.s32.totalorder %s18, 0
      %p59 = por %p57, %p58
      %p60 = scmp.ne.s32.totalorder %s52, %s54
      %p61 = scmp.eq.s32.totalorder %s23, 3
      %p62 = por %p60, %p61
      %p63 = scmp.ne.s32.totalorder %s54, %s55
      %p64 = scmp.eq.s32.totalorder %s23, 0
      %p65 = por %p63, %p64
      %p66 = scmp.ne.s32.totalorder %s54, %s55
      %p67 = scmp.eq.s32.totalorder %s24, 3
      %p68 = por %p66, %p67
      %p70 = scmp.ne.s32.totalorder %s55, %s69
      %p71 = scmp.eq.s32.totalorder %s24, 0
      %p72 = por %p70, %p71
      %s74 = sadd.s32 %s73, 1
      %p77 = scmp.eq.s32.totalorder %s18, 3
      %p78 = scmp.ne.s32.totalorder %s73, %s75
      %p79 = scmp.eq.s32.totalorder %s18, 0
      %p80 = por %p78, %p79
      %p81 = scmp.ne.s32.totalorder %s73, %s75
      %p82 = scmp.eq.s32.totalorder %s23, 3
      %p83 = por %p81, %p82
      %p84 = scmp.ne.s32.totalorder %s75, %s76
      %p85 = scmp.eq.s32.totalorder %s23, 0
      %p86 = por %p84, %p85
      %p87 = scmp.ne.s32.totalorder %s75, %s76
      %p88 = scmp.eq.s32.totalorder %s24, 3
      %p89 = por %p87, %p88
      %p91 = scmp.ne.s32.totalorder %s76, %s90
      %p92 = scmp.eq.s32.totalorder %s24, 0
      %p93 = por %p91, %p92
      %s95 = sadd.s32 %s94, 1
      %p98 = scmp.eq.s32.totalorder %s18, 3
      %p99 = scmp.ne.s32.totalorder %s94, %s96
      %p100 = scmp.eq.s32.totalorder %s18, 0
      %p101 = por %p99, %p100
      %p102 = scmp.ne.s32.totalorder %s94, %s96
      %p103 = scmp.eq.s32.totalorder %s23, 3
      %p104 = por %p102, %p103
      %p105 = scmp.ne.s32.totalorder %s96, %s97
      %p106 = scmp.eq.s32.totalorder %s23, 0
      %p107 = por %p105, %p106
      %p108 = scmp.ne.s32.totalorder %s96, %s97
      %p109 = scmp.eq.s32.totalorder %s24, 3
      %p110 = por %p108, %p109
      %p112 = scmp.ne.s32.totalorder %s97, %s111
      %p113 = scmp.eq.s32.totalorder %s24, 0
      %p114 = por %p112, %p113
      %s116 = sadd.s32 %s115, 1
      %p119 = scmp.eq.s32.totalorder %s18, 3
      %p120 = scmp.ne.s32.totalorder %s115, %s117
      %p121 = scmp.eq.s32.totalorder %s18, 0
      %p122 = por %p120, %p121
      %p123 = scmp.ne.s32.totalorder %s115, %s117
      %p124 = scmp.eq.s32.totalorder %s23, 3
      %p125 = por %p123, %p124
      %p126 = scmp.ne.s32.totalorder %s117, %s118
      %p127 = scmp.eq.s32.totalorder %s23, 0
      %p128 = por %p126, %p127
      %p129 = scmp.ne.s32.totalorder %s117, %s118
      %p130 = scmp.eq.s32.totalorder %s24, 3
      %p131 = por %p129, %p130
      %p133 = scmp.ne.s32.totalorder %s118, %s132
      %p134 = scmp.eq.s32.totalorder %s24, 0
      %p135 = por %p133, %p134
      %s137 = sadd.s32 %s136, 1
      %p140 = scmp.eq.s32.totalorder %s18, 3
      %p141 = scmp.ne.s32.totalorder %s136, %s138
      %p142 = scmp.eq.s32.totalorder %s18, 0
      %p143 = por %p141, %p142
      %p144 = scmp.ne.s32.totalorder %s136, %s138
      %p145 = scmp.eq.s32.totalorder %s23, 3
      %p146 = por %p144, %p145
      %p147 = scmp.ne.s32.totalorder %s138, %s139
      %p148 = scmp.eq.s32.totalorder %s23, 0
      %p149 = por %p147, %p148
      %p150 = scmp.ne.s32.totalorder %s138, %s139
      %p151 = scmp.eq.s32.totalorder %s24, 3
      %p152 = por %p150, %p151
      %p154 = scmp.ne.s32.totalorder %s139, %s153
      %p155 = scmp.eq.s32.totalorder %s24, 0
      %p156 = por %p154, %p155
      %s158 = sadd.s32 %s157, 1
      %p161 = scmp.eq.s32.totalorder %s18, 3
      %p162 = scmp.ne.s32.totalorder %s157, %s159
      %p163 = scmp.eq.s32.totalorder %s18, 0
      %p164 = por %p162, %p163
      %p165 = scmp.ne.s32.totalorder %s157, %s159
      %p166 = scmp.eq.s32.totalorder %s23, 3
      %p167 = por %p165, %p166
      %p168 = scmp.ne.s32.totalorder %s159, %s160
      %p169 = scmp.eq.s32.totalorder %s23, 0
      %p170 = por %p168, %p169
      %p171 = scmp.ne.s32.totalorder %s159, %s160
      %p172 = scmp.eq.s32.totalorder %s24, 3
      %p173 = por %p171, %p172
      %p175 = scmp.ne.s32.totalorder %s160, %s174
      %p176 = scmp.eq.s32.totalorder %s24, 0
      %p177 = por %p175, %p176
      %s179 = sadd.s32 %s178, 1
      %p182 = scmp.eq.s32.totalorder %s18, 3
      %p183 = scmp.ne.s32.totalorder %s178, %s180
      %p184 = scmp.eq.s32.totalorder %s18, 0
      %p185 = por %p183, %p184
      %p186 = scmp.ne.s32.totalorder %s178, %s180
      %p187 = scmp.eq.s32.totalorder %s23, 3
      %p188 = por %p186, %p187
      %p189 = scmp.ne.s32.totalorder %s180, %s181
      %p190 = scmp.eq.s32.totalorder %s23, 0
      %p191 = por %p189, %p190
      %p192 = scmp.ne.s32.totalorder %s180, %s181
      %p193 = scmp.eq.s32.totalorder %s24, 3
      %p194 = por %p192, %p193
      %p196 = scmp.ne.s32.totalorder %s181, %s195
      %p197 = scmp.eq.s32.totalorder %s24, 0
      %p198 = por %p196, %p197
      %s199 = ssub.s32 %s18, %s25
      %p200 = scmp.eq.s32.totalorder %s199, 0
      %s202 = sadd.s32 %s201, 1
      %s203 = scalar_select %p200, %s201, %s202
      %p206 = pneg %p200
      %p207 = scmp.eq.s32.totalorder %s18, 3
      %p208 = por %p206, %p207
      %p209 = scmp.ne.s32.totalorder %s201, %s204
      %p210 = scmp.eq.s32.totalorder %s18, 0
      %p211 = por %p209, %p210
      %p212 = scmp.ne.s32.totalorder %s201, %s204
      %p213 = scmp.eq.s32.totalorder %s23, 3
      %p214 = por %p212, %p213
      %p215 = scmp.ne.s32.totalorder %s204, %s205
      %p216 = scmp.eq.s32.totalorder %s23, 0
      %p217 = por %p215, %p216
      %p218 = scmp.ne.s32.totalorder %s204, %s205
      %p219 = scmp.eq.s32.totalorder %s24, 3
      %p220 = por %p218, %p219
      %p222 = scmp.ne.s32.totalorder %s205, %s221
      %p223 = scmp.eq.s32.totalorder %s24, 0
      %p224 = por %p222, %p223
      %p225 = scmp.le.s32.totalorder 1, %s18
      %p226 = scmp.lt.s32.totalorder %s18, 5
      %p227 = pnand %p225, %p226
      %p228 = pneg %p227
      // Predicated region
      $region9: #{glove_blstm_forward.1} parent=5 // pred_check
        _
      $region10: #{glove_blstm_forward.1} parent=5 // pred_check_branch
        %230 = sbr.rel (%p227) target = $region12
      $region11: #{glove_blstm_forward.1} parent=5 // pred_region
        %s231 = ssub.s32 %s18, 1
        // Predicated region
        $region13: #{glove_blstm_forward.1} parent=11 // pred_check
          %p232 = pneg %p65
        $region14: #{glove_blstm_forward.1} parent=11 // pred_check_branch
          %234 = sbr.rel (%p232) target = $region16
        $region15: #{glove_blstm_forward.1} parent=11 // pred_region
          %s236 = ssub.s32 2048, 2048
          %237 = vsyncadd [#allocation3], %s236
          %s238 = sshll.u32 [#allocation2], 4
          %s239 = int_to_ptr.vmem [resolvable:$true] %s238
          %244 = dma.hbm_to_vmem [thread:$0]  %s1, 2048, %s239, [#allocation3], 128, 128, 8
        $region16: #{glove_blstm_forward.1} parent=11 // pred_fallthru
          _
        // Predicated region
        $region17: #{glove_blstm_forward.1} parent=11 // pred_check
          %p245 = pneg %p86
        $region18: #{glove_blstm_forward.1} parent=11 // pred_check_branch
          %247 = sbr.rel (%p245) target = $region20
        $region19: #{glove_blstm_forward.1} parent=11 // pred_region
          _
        $region20: #{glove_blstm_forward.1} parent=11 // pred_fallthru
          _
        // Predicated region
        $region21: #{glove_blstm_forward.1} parent=11 // pred_check
          %p248 = pneg %p107
        $region22: #{glove_blstm_forward.1} parent=11 // pred_check_branch
          %250 = sbr.rel (%p248) target = $region24
        $region23: #{glove_blstm_forward.1} parent=11 // pred_region
          _
        $region24: #{glove_blstm_forward.1} parent=11 // pred_fallthru
          _
        // Predicated region
        $region25: #{glove_blstm_forward.1} parent=11 // pred_check
          %p251 = pneg %p128
        $region26: #{glove_blstm_forward.1} parent=11 // pred_check_branch
          %253 = sbr.rel (%p251) target = $region28
        $region27: #{glove_blstm_forward.1} parent=11 // pred_region
          _
        $region28: #{glove_blstm_forward.1} parent=11 // pred_fallthru
          _
        // Predicated region
        $region29: #{glove_blstm_forward.1} parent=11 // pred_check
          %p254 = pneg %p149
        $region30: #{glove_blstm_forward.1} parent=11 // pred_check_branch
          %256 = sbr.rel (%p254) target = $region32
        $region31: #{glove_blstm_forward.1} parent=11 // pred_region
          _
        $region32: #{glove_blstm_forward.1} parent=11 // pred_fallthru
          _
        // Predicated region
        $region33: #{glove_blstm_forward.1} parent=11 // pred_check
          %p257 = pneg %p170
        $region34: #{glove_blstm_forward.1} parent=11 // pred_check_branch
          %259 = sbr.rel (%p257) target = $region36
        $region35: #{glove_blstm_forward.1} parent=11 // pred_region
          _
        $region36: #{glove_blstm_forward.1} parent=11 // pred_fallthru
          _
        // Predicated region
        $region37: #{glove_blstm_forward.1} parent=11 // pred_check
          %p260 = pneg %p191
        $region38: #{glove_blstm_forward.1} parent=11 // pred_check_branch
          %262 = sbr.rel (%p260) target = $region40
        $region39: #{glove_blstm_forward.1} parent=11 // pred_region
          _
        $region40: #{glove_blstm_forward.1} parent=11 // pred_fallthru
          _
      $region12: #{glove_blstm_forward.1} parent=5 // pred_fallthru
        _
      %p263 = scmp.lt.s32.totalorder %s18, 4
      // Predicated region
      $region41: #{glove_blstm_forward.1} parent=5 // pred_check
        %p264 = pneg %p263
      $region42: #{glove_blstm_forward.1} parent=5 // pred_check_branch
        %266 = sbr.rel (%p264) target = $region44
      $region43: #{glove_blstm_forward.1} parent=5 // pred_region
        // Predicated region
        $region45: #{glove_blstm_forward.1} parent=43 // pred_check
          %p267 = pneg %p38
        $region46: #{glove_blstm_forward.1} parent=43 // pred_check_branch
          %269 = sbr.rel (%p267) target = $region48
        $region47: #{glove_blstm_forward.1} parent=43 // pred_region
          %p270 = scmp.lt.s32.totalorder %s18, 3
          %s271 = scalar_select %p270, %s18, 3
          %s272 = smul.addr %s271, 8
          %s273 = scalar_lea.vmem %s0, %s272
        $region48: #{glove_blstm_forward.1} parent=43 // pred_fallthru
          _
      $region44: #{glove_blstm_forward.1} parent=5 // pred_fallthru
        _
      %p274 = scmp.le.s32.totalorder 1, %s18
      %p275 = scmp.lt.s32.totalorder %s18, 5
      %p276 = pnand %p274, %p275
      %p277 = pneg %p276
      // Predicated region
      $region49: #{glove_blstm_forward.1} parent=5 // pred_check
        _
      $region50: #{glove_blstm_forward.1} parent=5 // pred_check_branch
        %279 = sbr.rel (%p276) target = $region52
      $region51: #{glove_blstm_forward.1} parent=5 // pred_region
        %s280 = ssub.s32 %s18, 1
        // Predicated region
        $region53: #{glove_blstm_forward.1} parent=51 // pred_check
          %p281 = pneg %p65
        $region54: #{glove_blstm_forward.1} parent=51 // pred_check_branch
          %283 = sbr.rel (%p281) target = $region56
        $region55: #{glove_blstm_forward.1} parent=51 // pred_region
          %284 = dma.done [#allocation3], 2048
        $region56: #{glove_blstm_forward.1} parent=51 // pred_fallthru
          _
        %p285 = scmp.lt.s32.totalorder %s23, 3
        %s286 = scalar_select %p285, %s23, 3
        %s287 = smul.addr %s286, 8
        %s288 = scalar_lea.vmem %s0, %s287
        %p289 = pneg %p44
        %p290 = pneg %p41
        %p291 = pneg %p65
        %p292 = pneg %p62
        %p293 = pneg %p86
        %p294 = pneg %p83
        %p295 = pneg %p107
        %p296 = pneg %p104
        %p297 = pneg %p128
        %p298 = pneg %p125
        %p299 = pneg %p149
        %p300 = pneg %p146
        %p301 = pneg %p170
        %p302 = pneg %p167
        %p303 = pneg %p191
        %p304 = pneg %p188
        %p305 = pneg %p217
        %p306 = pneg %p214
        %s307 = sand.u32 %s204, 1
        %s308 = scalar_lea.sflag [#allocation4], %s307
        %s309 = sand.u32 %s204, 1
        %s310 = smul.addr %s309, 8
        %s311 = scalar_lea.vmem [#allocation5], %s310
        %p312 = scmp.lt.s32.totalorder %s23, 3
        %s313 = scalar_select %p312, %s23, 3
        %s314 = smul.addr %s313, 8
        %s315 = scalar_lea.vmem %s0, %s314
        %v316 = vld [vmem:[%s315] sm:$0xff]
        %v317 = vld [vmem:[#allocation2] sm:$0xff]
        %v318 = vld [vmem:[#allocation2 + $0x8] sm:$0xff]
        %v319 = vld [vmem:[#allocation2 + $0x10] sm:$0xff]
        %v320 = vld [vmem:[#allocation2 + $0x18] sm:$0xff]
        %v321 = vld [vmem:[#allocation2 + $0x20] sm:$0xff]
        %v322 = vld [vmem:[#allocation2 + $0x28] sm:$0xff]
        %v323 = vld [vmem:[#allocation2 + $0x30] sm:$0xff]
        %v324 = vld [vmem:[#allocation2 + $0x38] sm:$0xff]
        %v325 = vld [vmem:[#allocation2 + $0x40] sm:$0xff]
        %v326 = vld [vmem:[#allocation2 + $0x48] sm:$0xff]
        %v327 = vld [vmem:[#allocation2 + $0x50] sm:$0xff]
        %v328 = vld [vmem:[#allocation2 + $0x58] sm:$0xff]
        %v329 = vld [vmem:[#allocation2 + $0x60] sm:$0xff]
        %v330 = vld [vmem:[#allocation2 + $0x68] sm:$0xff]
        %v331 = vld [vmem:[#allocation2 + $0x70] sm:$0xff]
        %v332 = vld [vmem:[#allocation2 + $0x78] sm:$0xff]
        %v333 = vld [vmem:[%s2] sm:$0x1]
        %v335 = vlaneseq
        %v336 = vshrl.u32 %v335, 7
        %v337 = vsub.s32 0, %v336
        %v338 = vrot.slane %v333, %v337
        %340 = vmatprep.subr.mxu0 0.0
        %341 = vmatpush1.msra.mxu0 %v317
        %342 = vmatprep.subr.mxu0 0.0
        %343 = vmatpush1.msra.mxu0 %v318
        %344 = vmatprep.subr.mxu0 0.0
        %345 = vmatpush1.msra.mxu0 %v319
        %346 = vmatprep.subr.mxu0 0.0
        %347 = vmatpush1.msra.mxu0 %v320
        %348 = vmatprep.subr.mxu0 0.0
        %349 = vmatpush1.msra.mxu0 %v321
        %350 = vmatprep.subr.mxu0 0.0
        %351 = vmatpush1.msra.mxu0 %v322
        %352 = vmatprep.subr.mxu0 0.0
        %353 = vmatpush1.msra.mxu0 %v323
        %354 = vmatprep.subr.mxu0 0.0
        %355 = vmatpush1.msra.mxu0 %v324
        %356 = vmatprep.subr.mxu0 0.0
        %357 = vmatpush1.msra.mxu0 %v325
        %358 = vmatprep.subr.mxu0 0.0
        %359 = vmatpush1.msra.mxu0 %v326
        %360 = vmatprep.subr.mxu0 0.0
        %361 = vmatpush1.msra.mxu0 %v327
        %362 = vmatprep.subr.mxu0 0.0
        %363 = vmatpush1.msra.mxu0 %v328
        %364 = vmatprep.subr.mxu0 0.0
        %365 = vmatpush1.msra.mxu0 %v329
        %366 = vmatprep.subr.mxu0 0.0
        %367 = vmatpush1.msra.mxu0 %v330
        %368 = vmatprep.subr.mxu0 0.0
        %369 = vmatpush1.msra.mxu0 %v331
        %370 = vmatprep.subr.mxu0 0.0
        %371 = vmatpush1.msra.mxu0 %v332
        %372 = vmatprep.subr.mxu0 0.0
        %373 = vmatpush1.msra.mxu0 0.0
        %374 = vmatprep.subr.mxu0 0.0
        %375 = vmatpush1.msra.mxu0 0.0
        %376 = vmatprep.subr.mxu0 0.0
        %377 = vmatpush1.msra.mxu0 0.0
        %378 = vmatprep.subr.mxu0 0.0
        %379 = vmatpush1.msra.mxu0 0.0
        %380 = vmatprep.subr.mxu0 0.0
        %381 = vmatpush1.msra.mxu0 0.0
        %382 = vmatprep.subr.mxu0 0.0
        %383 = vmatpush1.msra.mxu0 0.0
        %384 = vmatprep.subr.mxu0 0.0
        %385 = vmatpush1.msra.mxu0 0.0
        %386 = vmatprep.subr.mxu0 0.0
        %387 = vmatpush1.msra.mxu0 0.0
        %388 = vmatprep.subr.mxu0 0.0
        %389 = vmatpush1.msra.mxu0 0.0
        %390 = vmatprep.subr.mxu0 0.0
        %391 = vmatpush1.msra.mxu0 0.0
        %392 = vmatprep.subr.mxu0 0.0
        %393 = vmatpush1.msra.mxu0 0.0
        %394 = vmatprep.subr.mxu0 0.0
        %395 = vmatpush1.msra.mxu0 0.0
        %396 = vmatprep.subr.mxu0 0.0
        %397 = vmatpush1.msra.mxu0 0.0
        %398 = vmatprep.subr.mxu0 0.0
        %399 = vmatpush1.msra.mxu0 0.0
        %400 = vmatprep.subr.mxu0 0.0
        %401 = vmatpush1.msra.mxu0 0.0
        %402 = vmatprep.subr.mxu0 0.0
        %403 = vmatpush1.msra.mxu0 0.0
        %404 = vmatprep.mubr.f32.mxu0 0.0
        %405 = vmatmul.mubr.f32.gmra.mrb[0].mxu0 %v316
        %v406 = vpop.f32.mrb[0].mxu0
        %v407 = vadd.f32 %v338, %v406
        %v408 = vpop.f32.mrb[0].mxu0
        %409 = vdwg.mxu0
        %v410 = vlaneseq
        %v411 = vand.u32 %v410, 127
        %vm412 = vcmp.lt.s32.totalorder %v411, 0
        %v413 = vsub.s32 0, %v411
        %v414 = vsel %vm412, %v413, %v411
        %v415 = vshrl.u32 %v414, 5
        %v416 = vand.u32 %v414, 31
        %v417 = vsub.s32 0, %v416
        %v418 = vsel %vm412, %v417, %v416
        %vm419 = vcmp.ne.s32.totalorder %v418, 0
        %vm420 = vcmp.lt.s32.totalorder %v418, 0
        %vm421 = vmand %vm420, %vm419
        %v422 = vadd.s32 %v418, 32
        %v423 = vsel %vm421, %v422, %v418
        %vm424 = vcmp.lt.s32.totalorder %v423, 16
        %vm425 = vcmp.ge.s32.totalorder %v411, 64
        %vm426 = vcmp.lt.s32.totalorder %v411, 96
        %vm427 = vmand %vm425, %vm426
        %v429 = vrot.slane %v407, 7
        %v431 = vrot.slane %v407, 5
        %v433 = vrot.slane %v407, 3
        %v435 = vrot.slane %v407, 1
        %vm437 = vcmask 1040384
        %v438 = vsel %vm437, %v429, %v431
        %vm439 = vcmask 1041408
        %v440 = vsel %vm439, %v438, %v433
        %vm441 = vcmask 1042432
        %v442 = vsel %vm441, %v440, %v435
        %vm443 = vcmask 1043456
        %v444 = vsel %vm443, %v442, %v429
        %vm445 = vcmask 1044480
        %v446 = vsel %vm445, %v444, %v431
        %vm447 = vcmask 1045504
        %v448 = vsel %vm447, %v446, %v433
        %vm449 = vcmask 1046528
        %v450 = vsel %vm449, %v448, %v435
        %v451 = vsel %vm424, 1, 0
        %vm452 = vcmp.eq.s32.totalorder %v451, 1
        %v453 = vsel %vm452, %v407, %v450
        %v454 = vld [vmem:[%s3] sm:$0xff]
        %v455 = vld [vmem:[%s3 + $0x8] sm:$0xff]
        %v456 = vld [vmem:[%s3 + $0x10] sm:$0xff]
        %v457 = vld [vmem:[%s3 + $0x18] sm:$0xff]
        %vm458 = vcmask 261120
        %v460 = vsel %vm458, 0.0, 0
        %462 = vmatprep.subr.mxu0 0.0
        %463 = vmatpush1.msra.mxu0 %v454
        %464 = vmatprep.subr.mxu0 0.0
        %465 = vmatpush1.msra.mxu0 %v455
        %466 = vmatprep.subr.mxu0 0.0
        %467 = vmatpush1.msra.mxu0 %v456
        %468 = vmatprep.subr.mxu0 0.0
        %469 = vmatpush1.msra.mxu0 %v457
        %470 = vmatprep.subr.mxu0 0.0
        %471 = vmatpush1.msra.mxu0 0.0
        %472 = vmatprep.subr.mxu0 0.0
        %473 = vmatpush1.msra.mxu0 0.0
        %474 = vmatprep.subr.mxu0 0.0
        %475 = vmatpush1.msra.mxu0 0.0
        %476 = vmatprep.subr.mxu0 0.0
        %477 = vmatpush1.msra.mxu0 0.0
        %478 = vmatprep.subr.mxu0 0.0
        %479 = vmatpush1.msra.mxu0 0.0
        %480 = vmatprep.subr.mxu0 0.0
        %481 = vmatpush1.msra.mxu0 0.0
        %482 = vmatprep.subr.mxu0 0.0
        %483 = vmatpush1.msra.mxu0 0.0
        %484 = vmatprep.subr.mxu0 0.0
        %485 = vmatpush1.msra.mxu0 0.0
        %486 = vmatprep.subr.mxu0 0.0
        %487 = vmatpush1.msra.mxu0 0.0
        %488 = vmatprep.subr.mxu0 0.0
        %489 = vmatpush1.msra.mxu0 0.0
        %490 = vmatprep.subr.mxu0 0.0
        %491 = vmatpush1.msra.mxu0 0.0
        %492 = vmatprep.subr.mxu0 0.0
        %493 = vmatpush1.msra.mxu0 0.0
        %494 = vmatprep.subr.mxu0 0.0
        %495 = vmatpush1.msra.mxu0 0.0
        %496 = vmatprep.subr.mxu0 0.0
        %497 = vmatpush1.msra.mxu0 0.0
        %498 = vmatprep.subr.mxu0 0.0
        %499 = vmatpush1.msra.mxu0 0.0
        %500 = vmatprep.subr.mxu0 0.0
        %501 = vmatpush1.msra.mxu0 0.0
        %502 = vmatprep.subr.mxu0 0.0
        %503 = vmatpush1.msra.mxu0 0.0
        %504 = vmatprep.subr.mxu0 0.0
        %505 = vmatpush1.msra.mxu0 0.0
        %506 = vmatprep.subr.mxu0 0.0
        %507 = vmatpush1.msra.mxu0 0.0
        %508 = vmatprep.subr.mxu0 0.0
        %509 = vmatpush1.msra.mxu0 0.0
        %510 = vmatprep.subr.mxu0 0.0
        %511 = vmatpush1.msra.mxu0 0.0
        %512 = vmatprep.subr.mxu0 0.0
        %513 = vmatpush1.msra.mxu0 0.0
        %514 = vmatprep.subr.mxu0 0.0
        %515 = vmatpush1.msra.mxu0 0.0
        %516 = vmatprep.subr.mxu0 0.0
        %517 = vmatpush1.msra.mxu0 0.0
        %518 = vmatprep.subr.mxu0 0.0
        %519 = vmatpush1.msra.mxu0 0.0
        %520 = vmatprep.subr.mxu0 0.0
        %521 = vmatpush1.msra.mxu0 0.0
        %522 = vmatprep.subr.mxu0 0.0
        %523 = vmatpush1.msra.mxu0 0.0
        %524 = vmatprep.subr.mxu0 0.0
        %525 = vmatpush1.msra.mxu0 0.0
        %526 = vmatprep.mubr.f32.mxu0 0.0
        %527 = vmatmul.mubr.f32.gmra.mrb[0].mxu0 %v460
        %v528 = vpop.f32.mrb[0].mxu0
        %v529 = vadd.f32 0.0, %v528
        %v530 = vpop.f32.mrb[0].mxu0
        %531 = vdwg.mxu0
        %v532 = vadd.f32 %v453, %v529
        %v533 = vtanh.pop %v532
        %v534 = vmul.f32 %v533, 0.5
        %v535 = vadd.f32 %v534, 0.5
        %v536 = vsel %vm427, %v533, %v535
        %v537 = vmul.f32 %v536, 0.0
        %539 = vrot.lane.b32.xlu0 %v536, 64
        %v540 = vpop.permute.xlu0 %539
        %v542 = vmul.f32 %v536, %v540
        %544 = vrot.lane.b32.xlu0 %v542, 32
        %v545 = vpop.permute.xlu0 %544
        %v547 = vadd.f32 %v537, %v545
        %v548 = vtanh.pop %v547
        %550 = vrot.lane.b32.xlu0 %v548, 64
        %v551 = vpop.permute.xlu0 %550
        %v553 = vmul.f32 %v536, %v551
        %555 = vrot.lane.b32.xlu0 %v553, 32
        %v556 = vpop.permute.xlu0 %555
        %v557 = vsel %vm458, %v556, 0
        %559 = vmatprep.subr.mxu0 0.0
        %560 = vmatpush1.msra.mxu0 %v454
        %561 = vmatprep.subr.mxu0 0.0
        %562 = vmatpush1.msra.mxu0 %v455
        %563 = vmatprep.subr.mxu0 0.0
        %564 = vmatpush1.msra.mxu0 %v456
        %565 = vmatprep.subr.mxu0 0.0
        %566 = vmatpush1.msra.mxu0 %v457
        %567 = vmatprep.subr.mxu0 0.0
        %568 = vmatpush1.msra.mxu0 0.0
        %569 = vmatprep.subr.mxu0 0.0
        %570 = vmatpush1.msra.mxu0 0.0
        %571 = vmatprep.subr.mxu0 0.0
        %572 = vmatpush1.msra.mxu0 0.0
        %573 = vmatprep.subr.mxu0 0.0
        %574 = vmatpush1.msra.mxu0 0.0
        %575 = vmatprep.subr.mxu0 0.0
        %576 = vmatpush1.msra.mxu0 0.0
        %577 = vmatprep.subr.mxu0 0.0
        %578 = vmatpush1.msra.mxu0 0.0
        %579 = vmatprep.subr.mxu0 0.0
        %580 = vmatpush1.msra.mxu0 0.0
        %581 = vmatprep.subr.mxu0 0.0
        %582 = vmatpush1.msra.mxu0 0.0
        %583 = vmatprep.subr.mxu0 0.0
        %584 = vmatpush1.msra.mxu0 0.0
        %585 = vmatprep.subr.mxu0 0.0
        %586 = vmatpush1.msra.mxu0 0.0
        %587 = vmatprep.subr.mxu0 0.0
        %588 = vmatpush1.msra.mxu0 0.0
        %589 = vmatprep.subr.mxu0 0.0
        %590 = vmatpush1.msra.mxu0 0.0
        %591 = vmatprep.subr.mxu0 0.0
        %592 = vmatpush1.msra.mxu0 0.0
        %593 = vmatprep.subr.mxu0 0.0
        %594 = vmatpush1.msra.mxu0 0.0
        %595 = vmatprep.subr.mxu0 0.0
        %596 = vmatpush1.msra.mxu0 0.0
        %597 = vmatprep.subr.mxu0 0.0
        %598 = vmatpush1.msra.mxu0 0.0
        %599 = vmatprep.subr.mxu0 0.0
        %600 = vmatpush1.msra.mxu0 0.0
        %601 = vmatprep.subr.mxu0 0.0
        %602 = vmatpush1.msra.mxu0 0.0
        %603 = vmatprep.subr.mxu0 0.0
        %604 = vmatpush1.msra.mxu0 0.0
        %605 = vmatprep.subr.mxu0 0.0
        %606 = vmatpush1.msra.mxu0 0.0
        %607 = vmatprep.subr.mxu0 0.0
        %608 = vmatpush1.msra.mxu0 0.0
        %609 = vmatprep.subr.mxu0 0.0
        %610 = vmatpush1.msra.mxu0 0.0
        %611 = vmatprep.subr.mxu0 0.0
        %612 = vmatpush1.msra.mxu0 0.0
        %613 = vmatprep.subr.mxu0 0.0
        %614 = vmatpush1.msra.mxu0 0.0
        %615 = vmatprep.subr.mxu0 0.0
        %616 = vmatpush1.msra.mxu0 0.0
        %617 = vmatprep.subr.mxu0 0.0
        %618 = vmatpush1.msra.mxu0 0.0
        %619 = vmatprep.subr.mxu0 0.0
        %620 = vmatpush1.msra.mxu0 0.0
        %621 = vmatprep.subr.mxu0 0.0
        %622 = vmatpush1.msra.mxu0 0.0
        %623 = vmatprep.mubr.f32.mxu0 0.0
        %624 = vmatmul.mubr.f32.gmra.mrb[0].mxu0 %v557
        %v625 = vpop.f32.mrb[0].mxu0
        %v626 = vadd.f32 0.0, %v625
        %v627 = vpop.f32.mrb[0].mxu0
        %628 = vdwg.mxu0
        %v630 = vrot.slane %v626, 7
        %v632 = vadd.f32 %v453, %v630
        %v633 = vtanh.pop %v632
        %v634 = vmul.f32 %v633, 0.5
        %v635 = vadd.f32 %v634, 0.5
        %v636 = vsel %vm427, %v633, %v635
        %v638 = vrot.slane %v547, 7
        %v640 = vmul.f32 %v636, %v638
        %642 = vrot.lane.b32.xlu0 %v636, 64
        %v643 = vpop.permute.xlu0 %642
        %v645 = vmul.f32 %v636, %v643
        %647 = vrot.lane.b32.xlu0 %v645, 32
        %v648 = vpop.permute.xlu0 %647
        %v650 = vadd.f32 %v640, %v648
        %v651 = vtanh.pop %v650
        %653 = vrot.lane.b32.xlu0 %v651, 64
        %v654 = vpop.permute.xlu0 %653
        %v656 = vmul.f32 %v636, %v654
        %v658 = vrot.slane %v656, 1
        %659 = vrot.lane.b32.xlu0 %v658, 32
        %v660 = vpop.permute.xlu0 %659
        %v661 = vsel %vm458, %v660, 0
        %663 = vmatprep.subr.mxu0 0.0
        %664 = vmatpush1.msra.mxu0 %v454
        %665 = vmatprep.subr.mxu0 0.0
        %666 = vmatpush1.msra.mxu0 %v455
        %667 = vmatprep.subr.mxu0 0.0
        %668 = vmatpush1.msra.mxu0 %v456
        %669 = vmatprep.subr.mxu0 0.0
        %670 = vmatpush1.msra.mxu0 %v457
        %671 = vmatprep.subr.mxu0 0.0
        %672 = vmatpush1.msra.mxu0 0.0
        %673 = vmatprep.subr.mxu0 0.0
        %674 = vmatpush1.msra.mxu0 0.0
        %675 = vmatprep.subr.mxu0 0.0
        %676 = vmatpush1.msra.mxu0 0.0
        %677 = vmatprep.subr.mxu0 0.0
        %678 = vmatpush1.msra.mxu0 0.0
        %679 = vmatprep.subr.mxu0 0.0
        %680 = vmatpush1.msra.mxu0 0.0
        %681 = vmatprep.subr.mxu0 0.0
        %682 = vmatpush1.msra.mxu0 0.0
        %683 = vmatprep.subr.mxu0 0.0
        %684 = vmatpush1.msra.mxu0 0.0
        %685 = vmatprep.subr.mxu0 0.0
        %686 = vmatpush1.msra.mxu0 0.0
        %687 = vmatprep.subr.mxu0 0.0
        %688 = vmatpush1.msra.mxu0 0.0
        %689 = vmatprep.subr.mxu0 0.0
        %690 = vmatpush1.msra.mxu0 0.0
        %691 = vmatprep.subr.mxu0 0.0
        %692 = vmatpush1.msra.mxu0 0.0
        %693 = vmatprep.subr.mxu0 0.0
        %694 = vmatpush1.msra.mxu0 0.0
        %695 = vmatprep.subr.mxu0 0.0
        %696 = vmatpush1.msra.mxu0 0.0
        %697 = vmatprep.subr.mxu0 0.0
        %698 = vmatpush1.msra.mxu0 0.0
        %699 = vmatprep.subr.mxu0 0.0
        %700 = vmatpush1.msra.mxu0 0.0
        %701 = vmatprep.subr.mxu0 0.0
        %702 = vmatpush1.msra.mxu0 0.0
        %703 = vmatprep.subr.mxu0 0.0
        %704 = vmatpush1.msra.mxu0 0.0
        %705 = vmatprep.subr.mxu0 0.0
        %706 = vmatpush1.msra.mxu0 0.0
        %707 = vmatprep.subr.mxu0 0.0
        %708 = vmatpush1.msra.mxu0 0.0
        %709 = vmatprep.subr.mxu0 0.0
        %710 = vmatpush1.msra.mxu0 0.0
        %711 = vmatprep.subr.mxu0 0.0
        %712 = vmatpush1.msra.mxu0 0.0
        %713 = vmatprep.subr.mxu0 0.0
        %714 = vmatpush1.msra.mxu0 0.0
        %715 = vmatprep.subr.mxu0 0.0
        %716 = vmatpush1.msra.mxu0 0.0
        %717 = vmatprep.subr.mxu0 0.0
        %718 = vmatpush1.msra.mxu0 0.0
        %719 = vmatprep.subr.mxu0 0.0
        %720 = vmatpush1.msra.mxu0 0.0
        %721 = vmatprep.subr.mxu0 0.0
        %722 = vmatpush1.msra.mxu0 0.0
        %723 = vmatprep.subr.mxu0 0.0
        %724 = vmatpush1.msra.mxu0 0.0
        %725 = vmatprep.subr.mxu0 0.0
        %726 = vmatpush1.msra.mxu0 0.0
        %727 = vmatprep.mubr.f32.mxu0 0.0
        %728 = vmatmul.mubr.f32.gmra.mrb[0].mxu0 %v661
        %v729 = vpop.f32.mrb[0].mxu0
        %v730 = vadd.f32 0.0, %v729
        %v731 = vpop.f32.mrb[0].mxu0
        %732 = vdwg.mxu0
        %v734 = vrot.slane %v730, 6
        %v736 = vadd.f32 %v453, %v734
        %v737 = vtanh.pop %v736
        %v738 = vmul.f32 %v737, 0.5
        %v739 = vadd.f32 %v738, 0.5
        %v740 = vsel %vm427, %v737, %v739
        %v742 = vrot.slane %v650, 7
        %v744 = vmul.f32 %v740, %v742
        %746 = vrot.lane.b32.xlu0 %v740, 64
        %v747 = vpop.permute.xlu0 %746
        %v749 = vmul.f32 %v740, %v747
        %751 = vrot.lane.b32.xlu0 %v749, 32
        %v752 = vpop.permute.xlu0 %751
        %v754 = vadd.f32 %v744, %v752
        %v755 = vtanh.pop %v754
        %757 = vrot.lane.b32.xlu0 %v755, 64
        %v758 = vpop.permute.xlu0 %757
        %v760 = vmul.f32 %v740, %v758
        %v762 = vrot.slane %v760, 2
        %763 = vrot.lane.b32.xlu0 %v762, 32
        %v764 = vpop.permute.xlu0 %763
        %v765 = vsel %vm458, %v764, 0
        %767 = vmatprep.subr.mxu0 0.0
        %768 = vmatpush1.msra.mxu0 %v454
        %769 = vmatprep.subr.mxu0 0.0
        %770 = vmatpush1.msra.mxu0 %v455
        %771 = vmatprep.subr.mxu0 0.0
        %772 = vmatpush1.msra.mxu0 %v456
        %773 = vmatprep.subr.mxu0 0.0
        %774 = vmatpush1.msra.mxu0 %v457
        %775 = vmatprep.subr.mxu0 0.0
        %776 = vmatpush1.msra.mxu0 0.0
        %777 = vmatprep.subr.mxu0 0.0
        %778 = vmatpush1.msra.mxu0 0.0
        %779 = vmatprep.subr.mxu0 0.0
        %780 = vmatpush1.msra.mxu0 0.0
        %781 = vmatprep.subr.mxu0 0.0
        %782 = vmatpush1.msra.mxu0 0.0
        %783 = vmatprep.subr.mxu0 0.0
        %784 = vmatpush1.msra.mxu0 0.0
        %785 = vmatprep.subr.mxu0 0.0
        %786 = vmatpush1.msra.mxu0 0.0
        %787 = vmatprep.subr.mxu0 0.0
        %788 = vmatpush1.msra.mxu0 0.0
        %789 = vmatprep.subr.mxu0 0.0
        %790 = vmatpush1.msra.mxu0 0.0
        %791 = vmatprep.subr.mxu0 0.0
        %792 = vmatpush1.msra.mxu0 0.0
        %793 = vmatprep.subr.mxu0 0.0
        %794 = vmatpush1.msra.mxu0 0.0
        %795 = vmatprep.subr.mxu0 0.0
        %796 = vmatpush1.msra.mxu0 0.0
        %797 = vmatprep.subr.mxu0 0.0
        %798 = vmatpush1.msra.mxu0 0.0
        %799 = vmatprep.subr.mxu0 0.0
        %800 = vmatpush1.msra.mxu0 0.0
        %801 = vmatprep.subr.mxu0 0.0
        %802 = vmatpush1.msra.mxu0 0.0
        %803 = vmatprep.subr.mxu0 0.0
        %804 = vmatpush1.msra.mxu0 0.0
        %805 = vmatprep.subr.mxu0 0.0
        %806 = vmatpush1.msra.mxu0 0.0
        %807 = vmatprep.subr.mxu0 0.0
        %808 = vmatpush1.msra.mxu0 0.0
        %809 = vmatprep.subr.mxu0 0.0
        %810 = vmatpush1.msra.mxu0 0.0
        %811 = vmatprep.subr.mxu0 0.0
        %812 = vmatpush1.msra.mxu0 0.0
        %813 = vmatprep.subr.mxu0 0.0
        %814 = vmatpush1.msra.mxu0 0.0
        %815 = vmatprep.subr.mxu0 0.0
        %816 = vmatpush1.msra.mxu0 0.0
        %817 = vmatprep.subr.mxu0 0.0
        %818 = vmatpush1.msra.mxu0 0.0
        %819 = vmatprep.subr.mxu0 0.0
        %820 = vmatpush1.msra.mxu0 0.0
        %821 = vmatprep.subr.mxu0 0.0
        %822 = vmatpush1.msra.mxu0 0.0
        %823 = vmatprep.subr.mxu0 0.0
        %824 = vmatpush1.msra.mxu0 0.0
        %825 = vmatprep.subr.mxu0 0.0
        %826 = vmatpush1.msra.mxu0 0.0
        %827 = vmatprep.subr.mxu0 0.0
        %828 = vmatpush1.msra.mxu0 0.0
        %829 = vmatprep.subr.mxu0 0.0
        %830 = vmatpush1.msra.mxu0 0.0
        %831 = vmatprep.mubr.f32.mxu0 0.0
        %832 = vmatmul.mubr.f32.gmra.mrb[0].mxu0 %v765
        %v833 = vpop.f32.mrb[0].mxu0
        %v834 = vadd.f32 0.0, %v833
        %v835 = vpop.f32.mrb[0].mxu0
        %836 = vdwg.mxu0
        %v838 = vrot.slane %v834, 5
        %v840 = vadd.f32 %v453, %v838
        %v841 = vtanh.pop %v840
        %v842 = vmul.f32 %v841, 0.5
        %v843 = vadd.f32 %v842, 0.5
        %v844 = vsel %vm427, %v841, %v843
        %v846 = vrot.slane %v754, 7
        %v848 = vmul.f32 %v844, %v846
        %850 = vrot.lane.b32.xlu0 %v844, 64
        %v851 = vpop.permute.xlu0 %850
        %v853 = vmul.f32 %v844, %v851
        %855 = vrot.lane.b32.xlu0 %v853, 32
        %v856 = vpop.permute.xlu0 %855
        %v858 = vadd.f32 %v848, %v856
        %v859 = vtanh.pop %v858
        %861 = vrot.lane.b32.xlu0 %v859, 64
        %v862 = vpop.permute.xlu0 %861
        %v864 = vmul.f32 %v844, %v862
        %v866 = vrot.slane %v864, 3
        %867 = vrot.lane.b32.xlu0 %v866, 32
        %v868 = vpop.permute.xlu0 %867
        %v869 = vsel %vm458, %v868, 0
        %871 = vmatprep.subr.mxu0 0.0
        %872 = vmatpush1.msra.mxu0 %v454
        %873 = vmatprep.subr.mxu0 0.0
        %874 = vmatpush1.msra.mxu0 %v455
        %875 = vmatprep.subr.mxu0 0.0
        %876 = vmatpush1.msra.mxu0 %v456
        %877 = vmatprep.subr.mxu0 0.0
        %878 = vmatpush1.msra.mxu0 %v457
        %879 = vmatprep.subr.mxu0 0.0
        %880 = vmatpush1.msra.mxu0 0.0
        %881 = vmatprep.subr.mxu0 0.0
        %882 = vmatpush1.msra.mxu0 0.0
        %883 = vmatprep.subr.mxu0 0.0
        %884 = vmatpush1.msra.mxu0 0.0
        %885 = vmatprep.subr.mxu0 0.0
        %886 = vmatpush1.msra.mxu0 0.0
        %887 = vmatprep.subr.mxu0 0.0
        %888 = vmatpush1.msra.mxu0 0.0
        %889 = vmatprep.subr.mxu0 0.0
        %890 = vmatpush1.msra.mxu0 0.0
        %891 = vmatprep.subr.mxu0 0.0
        %892 = vmatpush1.msra.mxu0 0.0
        %893 = vmatprep.subr.mxu0 0.0
        %894 = vmatpush1.msra.mxu0 0.0
        %895 = vmatprep.subr.mxu0 0.0
        %896 = vmatpush1.msra.mxu0 0.0
        %897 = vmatprep.subr.mxu0 0.0
        %898 = vmatpush1.msra.mxu0 0.0
        %899 = vmatprep.subr.mxu0 0.0
        %900 = vmatpush1.msra.mxu0 0.0
        %901 = vmatprep.subr.mxu0 0.0
        %902 = vmatpush1.msra.mxu0 0.0
        %903 = vmatprep.subr.mxu0 0.0
        %904 = vmatpush1.msra.mxu0 0.0
        %905 = vmatprep.subr.mxu0 0.0
        %906 = vmatpush1.msra.mxu0 0.0
        %907 = vmatprep.subr.mxu0 0.0
        %908 = vmatpush1.msra.mxu0 0.0
        %909 = vmatprep.subr.mxu0 0.0
        %910 = vmatpush1.msra.mxu0 0.0
        %911 = vmatprep.subr.mxu0 0.0
        %912 = vmatpush1.msra.mxu0 0.0
        %913 = vmatprep.subr.mxu0 0.0
        %914 = vmatpush1.msra.mxu0 0.0
        %915 = vmatprep.subr.mxu0 0.0
        %916 = vmatpush1.msra.mxu0 0.0
        %917 = vmatprep.subr.mxu0 0.0
        %918 = vmatpush1.msra.mxu0 0.0
        %919 = vmatprep.subr.mxu0 0.0
        %920 = vmatpush1.msra.mxu0 0.0
        %921 = vmatprep.subr.mxu0 0.0
        %922 = vmatpush1.msra.mxu0 0.0
        %923 = vmatprep.subr.mxu0 0.0
        %924 = vmatpush1.msra.mxu0 0.0
        %925 = vmatprep.subr.mxu0 0.0
        %926 = vmatpush1.msra.mxu0 0.0
        %927 = vmatprep.subr.mxu0 0.0
        %928 = vmatpush1.msra.mxu0 0.0
        %929 = vmatprep.subr.mxu0 0.0
        %930 = vmatpush1.msra.mxu0 0.0
        %931 = vmatprep.subr.mxu0 0.0
        %932 = vmatpush1.msra.mxu0 0.0
        %933 = vmatprep.subr.mxu0 0.0
        %934 = vmatpush1.msra.mxu0 0.0
        %935 = vmatprep.mubr.f32.mxu0 0.0
        %936 = vmatmul.mubr.f32.gmra.mrb[0].mxu0 %v869
        %v937 = vpop.f32.mrb[0].mxu0
        %v938 = vadd.f32 0.0, %v937
        %v939 = vpop.f32.mrb[0].mxu0
        %940 = vdwg.mxu0
        %v942 = vrot.slane %v938, 4
        %v944 = vadd.f32 %v453, %v942
        %v945 = vtanh.pop %v944
        %v946 = vmul.f32 %v945, 0.5
        %v947 = vadd.f32 %v946, 0.5
        %v948 = vsel %vm427, %v945, %v947
        %v950 = vrot.slane %v858, 7
        %v952 = vmul.f32 %v948, %v950
        %954 = vrot.lane.b32.xlu0 %v948, 64
        %v955 = vpop.permute.xlu0 %954
        %v957 = vmul.f32 %v948, %v955
        %959 = vrot.lane.b32.xlu0 %v957, 32
        %v960 = vpop.permute.xlu0 %959
        %v962 = vadd.f32 %v952, %v960
        %v963 = vtanh.pop %v962
        %965 = vrot.lane.b32.xlu0 %v963, 64
        %v966 = vpop.permute.xlu0 %965
        %v968 = vmul.f32 %v948, %v966
        %v970 = vrot.slane %v968, 4
        %971 = vrot.lane.b32.xlu0 %v970, 32
        %v972 = vpop.permute.xlu0 %971
        %v973 = vsel %vm458, %v972, 0
        %975 = vmatprep.subr.mxu0 0.0
        %976 = vmatpush1.msra.mxu0 %v454
        %977 = vmatprep.subr.mxu0 0.0
        %978 = vmatpush1.msra.mxu0 %v455
        %979 = vmatprep.subr.mxu0 0.0
        %980 = vmatpush1.msra.mxu0 %v456
        %981 = vmatprep.subr.mxu0 0.0
        %982 = vmatpush1.msra.mxu0 %v457
        %983 = vmatprep.subr.mxu0 0.0
        %984 = vmatpush1.msra.mxu0 0.0
        %985 = vmatprep.subr.mxu0 0.0
        %986 = vmatpush1.msra.mxu0 0.0
        %987 = vmatprep.subr.mxu0 0.0
        %988 = vmatpush1.msra.mxu0 0.0
        %989 = vmatprep.subr.mxu0 0.0
        %990 = vmatpush1.msra.mxu0 0.0
        %991 = vmatprep.subr.mxu0 0.0
        %992 = vmatpush1.msra.mxu0 0.0
        %993 = vmatprep.subr.mxu0 0.0
        %994 = vmatpush1.msra.mxu0 0.0
        %995 = vmatprep.subr.mxu0 0.0
        %996 = vmatpush1.msra.mxu0 0.0
        %997 = vmatprep.subr.mxu0 0.0
        %998 = vmatpush1.msra.mxu0 0.0
        %999 = vmatprep.subr.mxu0 0.0
        %1000 = vmatpush1.msra.mxu0 0.0
        %1001 = vmatprep.subr.mxu0 0.0
        %1002 = vmatpush1.msra.mxu0 0.0
        %1003 = vmatprep.subr.mxu0 0.0
        %1004 = vmatpush1.msra.mxu0 0.0
        %1005 = vmatprep.subr.mxu0 0.0
        %1006 = vmatpush1.msra.mxu0 0.0
        %1007 = vmatprep.subr.mxu0 0.0
        %1008 = vmatpush1.msra.mxu0 0.0
        %1009 = vmatprep.subr.mxu0 0.0
        %1010 = vmatpush1.msra.mxu0 0.0
        %1011 = vmatprep.subr.mxu0 0.0
        %1012 = vmatpush1.msra.mxu0 0.0
        %1013 = vmatprep.subr.mxu0 0.0
        %1014 = vmatpush1.msra.mxu0 0.0
        %1015 = vmatprep.subr.mxu0 0.0
        %1016 = vmatpush1.msra.mxu0 0.0
        %1017 = vmatprep.subr.mxu0 0.0
        %1018 = vmatpush1.msra.mxu0 0.0
        %1019 = vmatprep.subr.mxu0 0.0
        %1020 = vmatpush1.msra.mxu0 0.0
        %1021 = vmatprep.subr.mxu0 0.0
        %1022 = vmatpush1.msra.mxu0 0.0
        %1023 = vmatprep.subr.mxu0 0.0
        %1024 = vmatpush1.msra.mxu0 0.0
        %1025 = vmatprep.subr.mxu0 0.0
        %1026 = vmatpush1.msra.mxu0 0.0
        %1027 = vmatprep.subr.mxu0 0.0
        %1028 = vmatpush1.msra.mxu0 0.0
        %1029 = vmatprep.subr.mxu0 0.0
        %1030 = vmatpush1.msra.mxu0 0.0
        %1031 = vmatprep.subr.mxu0 0.0
        %1032 = vmatpush1.msra.mxu0 0.0
        %1033 = vmatprep.subr.mxu0 0.0
        %1034 = vmatpush1.msra.mxu0 0.0
        %1035 = vmatprep.subr.mxu0 0.0
        %1036 = vmatpush1.msra.mxu0 0.0
        %1037 = vmatprep.subr.mxu0 0.0
        %1038 = vmatpush1.msra.mxu0 0.0
        %1039 = vmatprep.mubr.f32.mxu0 0.0
        %1040 = vmatmul.mubr.f32.gmra.mrb[0].mxu0 %v973
        %v1041 = vpop.f32.mrb[0].mxu0
        %v1042 = vadd.f32 0.0, %v1041
        %v1043 = vpop.f32.mrb[0].mxu0
        %1044 = vdwg.mxu0
        %v1046 = vrot.slane %v1042, 3
        %v1048 = vadd.f32 %v453, %v1046
        %v1049 = vtanh.pop %v1048
        %v1050 = vmul.f32 %v1049, 0.5
        %v1051 = vadd.f32 %v1050, 0.5
        %v1052 = vsel %vm427, %v1049, %v1051
        %v1054 = vrot.slane %v962, 7
        %v1056 = vmul.f32 %v1052, %v1054
        %1058 = vrot.lane.b32.xlu0 %v1052, 64
        %v1059 = vpop.permute.xlu0 %1058
        %v1061 = vmul.f32 %v1052, %v1059
        %1063 = vrot.lane.b32.xlu0 %v1061, 32
        %v1064 = vpop.permute.xlu0 %1063
        %v1066 = vadd.f32 %v1056, %v1064
        %v1067 = vtanh.pop %v1066
        %1069 = vrot.lane.b32.xlu0 %v1067, 64
        %v1070 = vpop.permute.xlu0 %1069
        %v1072 = vmul.f32 %v1052, %v1070
        %v1074 = vrot.slane %v1072, 5
        %1075 = vrot.lane.b32.xlu0 %v1074, 32
        %v1076 = vpop.permute.xlu0 %1075
        %v1077 = vsel %vm458, %v1076, 0
        %1079 = vmatprep.subr.mxu0 0.0
        %1080 = vmatpush1.msra.mxu0 %v454
        %1081 = vmatprep.subr.mxu0 0.0
        %1082 = vmatpush1.msra.mxu0 %v455
        %1083 = vmatprep.subr.mxu0 0.0
        %1084 = vmatpush1.msra.mxu0 %v456
        %1085 = vmatprep.subr.mxu0 0.0
        %1086 = vmatpush1.msra.mxu0 %v457
        %1087 = vmatprep.subr.mxu0 0.0
        %1088 = vmatpush1.msra.mxu0 0.0
        %1089 = vmatprep.subr.mxu0 0.0
        %1090 = vmatpush1.msra.mxu0 0.0
        %1091 = vmatprep.subr.mxu0 0.0
        %1092 = vmatpush1.msra.mxu0 0.0
        %1093 = vmatprep.subr.mxu0 0.0
        %1094 = vmatpush1.msra.mxu0 0.0
        %1095 = vmatprep.subr.mxu0 0.0
        %1096 = vmatpush1.msra.mxu0 0.0
        %1097 = vmatprep.subr.mxu0 0.0
        %1098 = vmatpush1.msra.mxu0 0.0
        %1099 = vmatprep.subr.mxu0 0.0
        %1100 = vmatpush1.msra.mxu0 0.0
        %1101 = vmatprep.subr.mxu0 0.0
        %1102 = vmatpush1.msra.mxu0 0.0
        %1103 = vmatprep.subr.mxu0 0.0
        %1104 = vmatpush1.msra.mxu0 0.0
        %1105 = vmatprep.subr.mxu0 0.0
        %1106 = vmatpush1.msra.mxu0 0.0
        %1107 = vmatprep.subr.mxu0 0.0
        %1108 = vmatpush1.msra.mxu0 0.0
        %1109 = vmatprep.subr.mxu0 0.0
        %1110 = vmatpush1.msra.mxu0 0.0
        %1111 = vmatprep.subr.mxu0 0.0
        %1112 = vmatpush1.msra.mxu0 0.0
        %1113 = vmatprep.subr.mxu0 0.0
        %1114 = vmatpush1.msra.mxu0 0.0
        %1115 = vmatprep.subr.mxu0 0.0
        %1116 = vmatpush1.msra.mxu0 0.0
        %1117 = vmatprep.subr.mxu0 0.0
        %1118 = vmatpush1.msra.mxu0 0.0
        %1119 = vmatprep.subr.mxu0 0.0
        %1120 = vmatpush1.msra.mxu0 0.0
        %1121 = vmatprep.subr.mxu0 0.0
        %1122 = vmatpush1.msra.mxu0 0.0
        %1123 = vmatprep.subr.mxu0 0.0
        %1124 = vmatpush1.msra.mxu0 0.0
        %1125 = vmatprep.subr.mxu0 0.0
        %1126 = vmatpush1.msra.mxu0 0.0
        %1127 = vmatprep.subr.mxu0 0.0
        %1128 = vmatpush1.msra.mxu0 0.0
        %1129 = vmatprep.subr.mxu0 0.0
        %1130 = vmatpush1.msra.mxu0 0.0
        %1131 = vmatprep.subr.mxu0 0.0
        %1132 = vmatpush1.msra.mxu0 0.0
        %1133 = vmatprep.subr.mxu0 0.0
        %1134 = vmatpush1.msra.mxu0 0.0
        %1135 = vmatprep.subr.mxu0 0.0
        %1136 = vmatpush1.msra.mxu0 0.0
        %1137 = vmatprep.subr.mxu0 0.0
        %1138 = vmatpush1.msra.mxu0 0.0
        %1139 = vmatprep.subr.mxu0 0.0
        %1140 = vmatpush1.msra.mxu0 0.0
        %1141 = vmatprep.subr.mxu0 0.0
        %1142 = vmatpush1.msra.mxu0 0.0
        %1143 = vmatprep.mubr.f32.mxu0 0.0
        %1144 = vmatmul.mubr.f32.gmra.mrb[0].mxu0 %v1077
        %v1145 = vpop.f32.mrb[0].mxu0
        %v1146 = vadd.f32 0.0, %v1145
        %v1147 = vpop.f32.mrb[0].mxu0
        %1148 = vdwg.mxu0
        %v1150 = vrot.slane %v1146, 2
        %v1152 = vadd.f32 %v453, %v1150
        %v1153 = vtanh.pop %v1152
        %v1154 = vmul.f32 %v1153, 0.5
        %v1155 = vadd.f32 %v1154, 0.5
        %v1156 = vsel %vm427, %v1153, %v1155
        %v1158 = vrot.slane %v1066, 7
        %v1160 = vmul.f32 %v1156, %v1158
        %1162 = vrot.lane.b32.xlu0 %v1156, 64
        %v1163 = vpop.permute.xlu0 %1162
        %v1165 = vmul.f32 %v1156, %v1163
        %1167 = vrot.lane.b32.xlu0 %v1165, 32
        %v1168 = vpop.permute.xlu0 %1167
        %v1170 = vadd.f32 %v1160, %v1168
        %v1171 = vtanh.pop %v1170
        %1173 = vrot.lane.b32.xlu0 %v1171, 64
        %v1174 = vpop.permute.xlu0 %1173
        %v1176 = vmul.f32 %v1156, %v1174
        %v1178 = vrot.slane %v1176, 6
        %1179 = vrot.lane.b32.xlu0 %v1178, 32
        %v1180 = vpop.permute.xlu0 %1179
        %v1181 = vsel %vm458, %v1180, 0
        %1183 = vmatprep.subr.mxu0 0.0
        %1184 = vmatpush1.msra.mxu0 %v454
        %1185 = vmatprep.subr.mxu0 0.0
        %1186 = vmatpush1.msra.mxu0 %v455
        %1187 = vmatprep.subr.mxu0 0.0
        %1188 = vmatpush1.msra.mxu0 %v456
        %1189 = vmatprep.subr.mxu0 0.0
        %1190 = vmatpush1.msra.mxu0 %v457
        %1191 = vmatprep.subr.mxu0 0.0
        %1192 = vmatpush1.msra.mxu0 0.0
        %1193 = vmatprep.subr.mxu0 0.0
        %1194 = vmatpush1.msra.mxu0 0.0
        %1195 = vmatprep.subr.mxu0 0.0
        %1196 = vmatpush1.msra.mxu0 0.0
        %1197 = vmatprep.subr.mxu0 0.0
        %1198 = vmatpush1.msra.mxu0 0.0
        %1199 = vmatprep.subr.mxu0 0.0
        %1200 = vmatpush1.msra.mxu0 0.0
        %1201 = vmatprep.subr.mxu0 0.0
        %1202 = vmatpush1.msra.mxu0 0.0
        %1203 = vmatprep.subr.mxu0 0.0
        %1204 = vmatpush1.msra.mxu0 0.0
        %1205 = vmatprep.subr.mxu0 0.0
        %1206 = vmatpush1.msra.mxu0 0.0
        %1207 = vmatprep.subr.mxu0 0.0
        %1208 = vmatpush1.msra.mxu0 0.0
        %1209 = vmatprep.subr.mxu0 0.0
        %1210 = vmatpush1.msra.mxu0 0.0
        %1211 = vmatprep.subr.mxu0 0.0
        %1212 = vmatpush1.msra.mxu0 0.0
        %1213 = vmatprep.subr.mxu0 0.0
        %1214 = vmatpush1.msra.mxu0 0.0
        %1215 = vmatprep.subr.mxu0 0.0
        %1216 = vmatpush1.msra.mxu0 0.0
        %1217 = vmatprep.subr.mxu0 0.0
        %1218 = vmatpush1.msra.mxu0 0.0
        %1219 = vmatprep.subr.mxu0 0.0
        %1220 = vmatpush1.msra.mxu0 0.0
        %1221 = vmatprep.subr.mxu0 0.0
        %1222 = vmatpush1.msra.mxu0 0.0
        %1223 = vmatprep.subr.mxu0 0.0
        %1224 = vmatpush1.msra.mxu0 0.0
        %1225 = vmatprep.subr.mxu0 0.0
        %1226 = vmatpush1.msra.mxu0 0.0
        %1227 = vmatprep.subr.mxu0 0.0
        %1228 = vmatpush1.msra.mxu0 0.0
        %1229 = vmatprep.subr.mxu0 0.0
        %1230 = vmatpush1.msra.mxu0 0.0
        %1231 = vmatprep.subr.mxu0 0.0
        %1232 = vmatpush1.msra.mxu0 0.0
        %1233 = vmatprep.subr.mxu0 0.0
        %1234 = vmatpush1.msra.mxu0 0.0
        %1235 = vmatprep.subr.mxu0 0.0
        %1236 = vmatpush1.msra.mxu0 0.0
        %1237 = vmatprep.subr.mxu0 0.0
        %1238 = vmatpush1.msra.mxu0 0.0
        %1239 = vmatprep.subr.mxu0 0.0
        %1240 = vmatpush1.msra.mxu0 0.0
        %1241 = vmatprep.subr.mxu0 0.0
        %1242 = vmatpush1.msra.mxu0 0.0
        %1243 = vmatprep.subr.mxu0 0.0
        %1244 = vmatpush1.msra.mxu0 0.0
        %1245 = vmatprep.subr.mxu0 0.0
        %1246 = vmatpush1.msra.mxu0 0.0
        %1247 = vmatprep.mubr.f32.mxu0 0.0
        %1248 = vmatmul.mubr.f32.gmra.mrb[0].mxu0 %v1181
        %v1249 = vpop.f32.mrb[0].mxu0
        %v1250 = vadd.f32 0.0, %v1249
        %v1251 = vpop.f32.mrb[0].mxu0
        %1252 = vdwg.mxu0
        %v1254 = vrot.slane %v1250, 1
        %v1256 = vadd.f32 %v453, %v1254
        %v1257 = vtanh.pop %v1256
        %v1258 = vmul.f32 %v1257, 0.5
        %v1259 = vadd.f32 %v1258, 0.5
        %v1260 = vsel %vm427, %v1257, %v1259
        %v1262 = vrot.slane %v1170, 7
        %v1264 = vmul.f32 %v1260, %v1262
        %1266 = vrot.lane.b32.xlu0 %v1260, 64
        %v1267 = vpop.permute.xlu0 %1266
        %v1269 = vmul.f32 %v1260, %v1267
        %1271 = vrot.lane.b32.xlu0 %v1269, 32
        %v1272 = vpop.permute.xlu0 %1271
        %v1274 = vadd.f32 %v1264, %v1272
        %v1275 = vtanh.pop %v1274
        %1277 = vrot.lane.b32.xlu0 %v1275, 64
        %v1278 = vpop.permute.xlu0 %1277
        %v1280 = vmul.f32 %v1260, %v1278
        %v1281 = vsel %vm437, %v553, %v656
        %v1282 = vsel %vm439, %v1281, %v760
        %v1283 = vsel %vm441, %v1282, %v864
        %v1284 = vsel %vm443, %v1283, %v968
        %v1285 = vsel %vm445, %v1284, %v1072
        %v1286 = vsel %vm447, %v1285, %v1176
        %v1287 = vsel %vm449, %v1286, %v1280
        %v1289 = vrot.slane %v1280, 7
        %v1291 = vrot.slane %v1176, 5
        %v1293 = vrot.slane %v1072, 3
        %v1295 = vrot.slane %v968, 1
        %v1297 = vrot.slane %v864, 7
        %v1299 = vrot.slane %v760, 5
        %v1301 = vrot.slane %v656, 3
        %v1303 = vrot.slane %v553, 1
        %v1305 = vsel %vm437, %v1289, %v1291
        %v1306 = vsel %vm439, %v1305, %v1293
        %v1307 = vsel %vm441, %v1306, %v1295
        %v1308 = vsel %vm443, %v1307, %v1297
        %v1309 = vsel %vm445, %v1308, %v1299
        %v1310 = vsel %vm447, %v1309, %v1301
        %v1311 = vsel %vm449, %v1310, %v1303
        %vm1312 = vcmp.lt.s32.totalorder %v411, 16
        %v1313 = vsel %vm1312, 1, 0
        %vm1314 = vcmp.eq.s32.totalorder %v1313, 1
        %1316 = vrot.lane.b32.xlu0 %v1287, 32
        %v1317 = vpop.permute.xlu0 %1316
        %1320 = vrot.lane.b32.xlu0 %v1311, 32
        %v1321 = vpop.permute.xlu0 %1320
        %v1323 = vsel %vm1314, %v1317, %v1321
        %v1324 = vld [vmem:[%s4] sm:$0xff]
        %v1325 = vld [vmem:[%s4 + $0x8] sm:$0xff]
        %v1326 = vld [vmem:[%s4 + $0x10] sm:$0xff]
        %v1327 = vld [vmem:[%s4 + $0x18] sm:$0xff]
        %v1328 = vld [vmem:[%s5] sm:$0x1]
        %v1330 = vlaneseq
        %v1331 = vshrl.u32 %v1330, 7
        %v1332 = vsub.s32 0, %v1331
        %v1333 = vrot.slane %v1328, %v1332
        %v1336 = vsel %vm458, %v1323, 0
        %1338 = vmatprep.subr.mxu0 0.0
        %1339 = vmatpush1.msra.mxu0 %v1324
        %1340 = vmatprep.subr.mxu0 0.0
        %1341 = vmatpush1.msra.mxu0 %v1325
        %1342 = vmatprep.subr.mxu0 0.0
        %1343 = vmatpush1.msra.mxu0 %v1326
        %1344 = vmatprep.subr.mxu0 0.0
        %1345 = vmatpush1.msra.mxu0 %v1327
        %1346 = vmatprep.subr.mxu0 0.0
        %1347 = vmatpush1.msra.mxu0 0.0
        %1348 = vmatprep.subr.mxu0 0.0
        %1349 = vmatpush1.msra.mxu0 0.0
        %1350 = vmatprep.subr.mxu0 0.0
        %1351 = vmatpush1.msra.mxu0 0.0
        %1352 = vmatprep.subr.mxu0 0.0
        %1353 = vmatpush1.msra.mxu0 0.0
        %1354 = vmatprep.subr.mxu0 0.0
        %1355 = vmatpush1.msra.mxu0 0.0
        %1356 = vmatprep.subr.mxu0 0.0
        %1357 = vmatpush1.msra.mxu0 0.0
        %1358 = vmatprep.subr.mxu0 0.0
        %1359 = vmatpush1.msra.mxu0 0.0
        %1360 = vmatprep.subr.mxu0 0.0
        %1361 = vmatpush1.msra.mxu0 0.0
        %1362 = vmatprep.subr.mxu0 0.0
        %1363 = vmatpush1.msra.mxu0 0.0
        %1364 = vmatprep.subr.mxu0 0.0
        %1365 = vmatpush1.msra.mxu0 0.0
        %1366 = vmatprep.subr.mxu0 0.0
        %1367 = vmatpush1.msra.mxu0 0.0
        %1368 = vmatprep.subr.mxu0 0.0
        %1369 = vmatpush1.msra.mxu0 0.0
        %1370 = vmatprep.subr.mxu0 0.0
        %1371 = vmatpush1.msra.mxu0 0.0
        %1372 = vmatprep.subr.mxu0 0.0
        %1373 = vmatpush1.msra.mxu0 0.0
        %1374 = vmatprep.subr.mxu0 0.0
        %1375 = vmatpush1.msra.mxu0 0.0
        %1376 = vmatprep.subr.mxu0 0.0
        %1377 = vmatpush1.msra.mxu0 0.0
        %1378 = vmatprep.subr.mxu0 0.0
        %1379 = vmatpush1.msra.mxu0 0.0
        %1380 = vmatprep.subr.mxu0 0.0
        %1381 = vmatpush1.msra.mxu0 0.0
        %1382 = vmatprep.subr.mxu0 0.0
        %1383 = vmatpush1.msra.mxu0 0.0
        %1384 = vmatprep.subr.mxu0 0.0
        %1385 = vmatpush1.msra.mxu0 0.0
        %1386 = vmatprep.subr.mxu0 0.0
        %1387 = vmatpush1.msra.mxu0 0.0
        %1388 = vmatprep.subr.mxu0 0.0
        %1389 = vmatpush1.msra.mxu0 0.0
        %1390 = vmatprep.subr.mxu0 0.0
        %1391 = vmatpush1.msra.mxu0 0.0
        %1392 = vmatprep.subr.mxu0 0.0
        %1393 = vmatpush1.msra.mxu0 0.0
        %1394 = vmatprep.subr.mxu0 0.0
        %1395 = vmatpush1.msra.mxu0 0.0
        %1396 = vmatprep.subr.mxu0 0.0
        %1397 = vmatpush1.msra.mxu0 0.0
        %1398 = vmatprep.subr.mxu0 0.0
        %1399 = vmatpush1.msra.mxu0 0.0
        %1400 = vmatprep.subr.mxu0 0.0
        %1401 = vmatpush1.msra.mxu0 0.0
        %1402 = vmatprep.mubr.f32.mxu0 0.0
        %1403 = vmatmul.mubr.f32.gmra.mrb[0].mxu0 %v1336
        %v1404 = vpop.f32.mrb[0].mxu0
        %v1405 = vadd.f32 %v1333, %v1404
        %v1406 = vpop.f32.mrb[0].mxu0
        %1407 = vdwg.mxu0
        %vm1408 = vcmp.gt.f32.partialorder %v1405, 0.0
        %v1409 = vmin.f32 %v1405, 0.0
        %v1410 = vmul.f32 %v1409, 1.442695
        %v1411 = vpow.pop %v1410
        %v1412 = vsub.f32 %v1411, 1.0
        %v1413 = vsel %vm1408, %v1405, %v1412
        %v1414 = vld [vmem:[%s6] sm:$0xff]
        %v1415 = vld [vmem:[%s6 + $0x8] sm:$0xff]
        %v1416 = vld [vmem:[%s7] sm:$0x1]
        %v1418 = vlaneseq
        %v1419 = vshrl.u32 %v1418, 7
        %v1420 = vsub.s32 0, %v1419
        %v1421 = vrot.slane %v1416, %v1420
        %vm1423 = vcmask 130048
        %v1425 = vsel %vm1423, %v1413, 0
        %1427 = vmatprep.subr.mxu0 0.0
        %1428 = vmatpush1.msra.mxu0 %v1414
        %1429 = vmatprep.subr.mxu0 0.0
        %1430 = vmatpush1.msra.mxu0 %v1415
        %1431 = vmatprep.subr.mxu0 0.0
        %1432 = vmatpush1.msra.mxu0 0.0
        %1433 = vmatprep.subr.mxu0 0.0
        %1434 = vmatpush1.msra.mxu0 0.0
        %1435 = vmatprep.subr.mxu0 0.0
        %1436 = vmatpush1.msra.mxu0 0.0
        %1437 = vmatprep.subr.mxu0 0.0
        %1438 = vmatpush1.msra.mxu0 0.0
        %1439 = vmatprep.subr.mxu0 0.0
        %1440 = vmatpush1.msra.mxu0 0.0
        %1441 = vmatprep.subr.mxu0 0.0
        %1442 = vmatpush1.msra.mxu0 0.0
        %1443 = vmatprep.subr.mxu0 0.0
        %1444 = vmatpush1.msra.mxu0 0.0
        %1445 = vmatprep.subr.mxu0 0.0
        %1446 = vmatpush1.msra.mxu0 0.0
        %1447 = vmatprep.subr.mxu0 0.0
        %1448 = vmatpush1.msra.mxu0 0.0
        %1449 = vmatprep.subr.mxu0 0.0
        %1450 = vmatpush1.msra.mxu0 0.0
        %1451 = vmatprep.subr.mxu0 0.0
        %1452 = vmatpush1.msra.mxu0 0.0
        %1453 = vmatprep.subr.mxu0 0.0
        %1454 = vmatpush1.msra.mxu0 0.0
        %1455 = vmatprep.subr.mxu0 0.0
        %1456 = vmatpush1.msra.mxu0 0.0
        %1457 = vmatprep.subr.mxu0 0.0
        %1458 = vmatpush1.msra.mxu0 0.0
        %1459 = vmatprep.subr.mxu0 0.0
        %1460 = vmatpush1.msra.mxu0 0.0
        %1461 = vmatprep.subr.mxu0 0.0
        %1462 = vmatpush1.msra.mxu0 0.0
        %1463 = vmatprep.subr.mxu0 0.0
        %1464 = vmatpush1.msra.mxu0 0.0
        %1465 = vmatprep.subr.mxu0 0.0
        %1466 = vmatpush1.msra.mxu0 0.0
        %1467 = vmatprep.subr.mxu0 0.0
        %1468 = vmatpush1.msra.mxu0 0.0
        %1469 = vmatprep.subr.mxu0 0.0
        %1470 = vmatpush1.msra.mxu0 0.0
        %1471 = vmatprep.subr.mxu0 0.0
        %1472 = vmatpush1.msra.mxu0 0.0
        %1473 = vmatprep.subr.mxu0 0.0
        %1474 = vmatpush1.msra.mxu0 0.0
        %1475 = vmatprep.subr.mxu0 0.0
        %1476 = vmatpush1.msra.mxu0 0.0
        %1477 = vmatprep.subr.mxu0 0.0
        %1478 = vmatpush1.msra.mxu0 0.0
        %1479 = vmatprep.subr.mxu0 0.0
        %1480 = vmatpush1.msra.mxu0 0.0
        %1481 = vmatprep.subr.mxu0 0.0
        %1482 = vmatpush1.msra.mxu0 0.0
        %1483 = vmatprep.subr.mxu0 0.0
        %1484 = vmatpush1.msra.mxu0 0.0
        %1485 = vmatprep.subr.mxu0 0.0
        %1486 = vmatpush1.msra.mxu0 0.0
        %1487 = vmatprep.subr.mxu0 0.0
        %1488 = vmatpush1.msra.mxu0 0.0
        %1489 = vmatprep.subr.mxu0 0.0
        %1490 = vmatpush1.msra.mxu0 0.0
        %1491 = vmatprep.mubr.f32.mxu0 0.0
        %1492 = vmatmul.mubr.f32.gmra.mrb[0].mxu0 %v1425
        %v1493 = vpop.f32.mrb[0].mxu0
        %v1494 = vadd.f32 %v1421, %v1493
        %v1495 = vpop.f32.mrb[0].mxu0
        %1496 = vdwg.mxu0
        %1497 = vst [vmem:[%s311] sm:$0xff] %v1494
        %s1498 = sand.u32 %s204, 1
        %s1499 = scalar_lea.sflag [#allocation4], %s1498
        %s1500 = sand.u32 %s204, 1
        %s1501 = smul.addr %s1500, 8
        %s1502 = scalar_lea.vmem [#allocation5], %s1501
        // Predicated region
        $region57: #{glove_blstm_forward.1} parent=51 // pred_check
          %p1503 = pneg %p214
        $region58: #{glove_blstm_forward.1} parent=51 // pred_check_branch
          %1505 = sbr.rel (%p1503) target = $region60
        $region59: #{glove_blstm_forward.1} parent=51 // pred_region
          %s1507 = ssub.s32 128, 128
          %1508 = vsyncadd %s1499, %s1507
          %s1509 = smul.addr %s23, 128
          %s1510 = scalar_lea.hbm %s8, %s1509
          %s1512 = sshll.u32 %s1502, 4
          %s1513 = int_to_ptr.vmem [resolvable:$true] %s1512
          %1515 = dma.vmem_to_hbm [thread:$0]  %s1513, 128, %s1510, %s1499
        $region60: #{glove_blstm_forward.1} parent=51 // pred_fallthru
          _
      $region52: #{glove_blstm_forward.1} parent=5 // pred_fallthru
        _
      %p1516 = scmp.le.s32.totalorder 2, %s18
      // Predicated region
      $region61: #{glove_blstm_forward.1} parent=5 // pred_check
        %p1517 = pneg %p1516
      $region62: #{glove_blstm_forward.1} parent=5 // pred_check_branch
        %1519 = sbr.rel (%p1517) target = $region64
      $region63: #{glove_blstm_forward.1} parent=5 // pred_region
        %s1520 = ssub.s32 %s18, 2
        // Predicated region
        $region65: #{glove_blstm_forward.1} parent=63 // pred_check
          %p1521 = pneg %p220
        $region66: #{glove_blstm_forward.1} parent=63 // pred_check_branch
          %1523 = sbr.rel (%p1521) target = $region68
        $region67: #{glove_blstm_forward.1} parent=63 // pred_region
          %s1524 = sand.u32 %s205, 1
          %s1525 = scalar_lea.sflag [#allocation4], %s1524
          %s1526 = sand.u32 %s205, 1
          %s1527 = smul.addr %s1526, 8
          %s1528 = scalar_lea.vmem [#allocation5], %s1527
          %1529 = dma.done %s1525, 128
        $region68: #{glove_blstm_forward.1} parent=63 // pred_fallthru
          _
      $region64: #{glove_blstm_forward.1} parent=5 // pred_fallthru
        _
    $region6: #{glove_blstm_forward.1} parent=1 // loop_footer
      %s22 = sadd.s32 1, %s18
    $region7: #{glove_blstm_forward.1} parent=1 // loop_footer_branch
      %17 = sbr.rel target = $region3
    $region8: #{glove_blstm_forward.1} parent=1 // loop_exit
      _
    %1530 = vsyncpa [#allocation3], 1
    %s1531 = scalar_lea.sflag [#allocation3], 1
    %1532 = vsyncpa %s1531, 1
    %1533 = vsyncpa [#allocation4], 1
    %s1534 = scalar_lea.sflag [#allocation4], 1
    %1535 = vsyncpa %s1534, 1

</llo_original>
